<compile_context>
chip_gen: v7x
topology: tpu7x:2x2x1
jax: 0.10.0
libtpu: 0.0.40
codegen_flags: <defaults>
</compile_context>

<pallas_src>
import functools

import jax
import jax.numpy as jnp
from jax.experimental import pallas as pl
from jax.experimental.pallas import tpu as pltpu


# ---------------------------------------------------------------------------
# Wrapper-side band-matrix construction (plain XLA, runs once per weight set).
# ---------------------------------------------------------------------------
def _width_band(w_dx, w_out):
    """(kw, cin, cout) weights -> (w_out*cin, w_out*cout) width-banded matrix.

    M[xs*cin+ci, xo*cout+co] = sum_{dx : xo+dx-1 == xs} w_dx[dx, ci, co]
    (SAME width padding handled by dropping out-of-range taps).
    """
    kw, cin, cout = w_dx.shape
    xs = jnp.arange(w_out)[:, None]                 # input column (full res)
    xo = jnp.arange(w_out)[None, :]                 # output column
    dx = xs - xo + 1
    valid = ((dx >= 0) & (dx < kw)).astype(w_dx.dtype)
    dxc = jnp.clip(dx, 0, kw - 1)
    taps = w_dx[dxc] * valid[:, :, None, None]      # (w_out, w_out, cin, cout)
    return jnp.transpose(taps, (0, 2, 1, 3)).reshape(w_out * cin, w_out * cout)


def _up_width_band(w_dx, w_low):
    """Like _width_band, but the input row is LOW-RES and the 2x nearest
    width duplication is folded in: (w_low*cin, 2*w_low*cout)."""
    kw, cin, cout = w_dx.shape
    w_out = 2 * w_low
    xu = jnp.arange(w_out)[:, None]                 # upsampled input column
    xo = jnp.arange(w_out)[None, :]
    dx = xu - xo + 1
    valid = ((dx >= 0) & (dx < kw)).astype(w_dx.dtype)
    dxc = jnp.clip(dx, 0, kw - 1)
    taps = w_dx[dxc] * valid[:, :, None, None]      # (w_out, w_out, cin, cout)
    taps = taps.reshape(w_low, 2, w_out, cin, cout).sum(axis=1)   # xu -> xu//2
    return jnp.transpose(taps, (0, 2, 1, 3)).reshape(w_low * cin, w_out * cout)


def _conv1_band(w1, cx, w_low):
    """K-stacked conv1 band matrix, paired (even | odd) output columns.

    Operand blocks per pair row t (matching the kernel's concat order):
      A0 = x[t-1], A1 = x[t], A2 = x[t+1]                  (low-res rows)
      P_prev = skip[2t-2 | 2t-1], P_cur = skip[2t | 2t+1], P_next = skip[2t+2 | 2t+3]
    Output columns [0:L) are output row 2t, [L:2L) are row 2t+1, L = 2*w_low*cout.
    """
    _, _, c1, cout = w1.shape
    cs = c1 - cx
    w_out = 2 * w_low
    wx = w1[:, :, :cx, :]
    zx = jnp.zeros((w_low * cx, w_out * cout), w1.dtype)

    # even output row 2t  : A0 <- w[0],          A1 <- w[1] + w[2]
    # odd  output row 2t+1: A1 <- w[0] + w[1],   A2 <- w[2]
    x_even = jnp.concatenate([_up_width_band(wx[0], w_low),
                              _up_width_band(wx[1] + wx[2], w_low),
                              zx], axis=0)
    x_odd = jnp.concatenate([zx,
                             _up_width_band(wx[0] + wx[1], w_low),
                             _up_width_band(wx[2], w_low)], axis=0)
    if cs == 0:
        return jnp.concatenate([x_even, x_odd], axis=1)

    ws = w1[:, :, cx:, :]
    zs = jnp.zeros((w_out * cs, w_out * cout), w1.dtype)
    wb = [_width_band(ws[dy], w_out) for dy in range(3)]
    # even row 2t   needs skip rows 2t-1 (w0), 2t (w1), 2t+1 (w2)
    # odd  row 2t+1 needs skip rows 2t (w0), 2t+1 (w1), 2t+2 (w2)
    # sub-block order: [2t-2, 2t-1 | 2t, 2t+1 | 2t+2, 2t+3]
    s_even = jnp.concatenate([zs, wb[0], wb[1], wb[2], zs, zs], axis=0)
    s_odd = jnp.concatenate([zs, zs, wb[0], wb[1], wb[2], zs], axis=0)
    return jnp.concatenate(
        [jnp.concatenate([x_even, s_even], axis=0),
         jnp.concatenate([x_odd, s_odd], axis=0)], axis=1)


def _conv2_band(w2, w_out):
    """K-stacked conv2 band matrix: operand blocks M0..M3 = y1 rows
    2t-1, 2t, 2t+1, 2t+2; paired (even | odd) output columns."""
    _, _, cmid, cout = w2.shape
    zs = jnp.zeros((w_out * cmid, w_out * cout), w2.dtype)
    wb = [_width_band(w2[dy], w_out) for dy in range(3)]
    even = jnp.concatenate([wb[0], wb[1], wb[2], zs], axis=0)
    odd = jnp.concatenate([zs, wb[0], wb[1], wb[2]], axis=0)
    return jnp.concatenate([even, odd], axis=1)


# ---------------------------------------------------------------------------
# The fused kernel (one grid step == a stack of B images).
# ---------------------------------------------------------------------------
def _decoder_block_kernel(*refs, has_skip):
    if has_skip:
        x_ref, skip_ref, b1_ref, b2_ref, aff_ref, o_ref = refs
    else:
        x_ref, b1_ref, b2_ref, aff_ref, o_ref = refs
        skip_ref = None

    f32, bf16 = jnp.float32, jnp.bfloat16
    bimg, h, kx = x_ref.shape            # B low-res images, h rows, W*Cin lanes
    rows = bimg * h                      # one matmul row per output-row pair
    lanes2 = o_ref.shape[2]              # 2 * (2W * Cout)  (paired output lanes)
    lanes = lanes2 // 2

    def pair_idx(shape):
        # pair index t within each image, broadcast to `shape`
        return jax.lax.broadcasted_iota(jnp.int32, shape, 0) % h

    # ---- conv1 operand:  [ x[t-1] | x[t] | x[t+1] | skip pairs t-1, t, t+1 ] ----
    xv = x_ref[...].reshape(rows, kx)                            # f32 low-res rows
    tx = pair_idx((rows, kx))
    a0 = jnp.where(tx == 0, 0.0, jnp.roll(xv, 1, axis=0))        # low row t-1
    a2 = jnp.where(tx == h - 1, 0.0, jnp.roll(xv, -1, axis=0))   # low row t+1
    parts = [a0, xv, a2]

    if has_skip:
        ks2 = skip_ref.shape[2]                                  # 2 * (2W * Cskip)
        sv = skip_ref[...].reshape(rows, ks2)                    # [skip 2t | 2t+1]
        ts = pair_idx((rows, ks2))
        p_prev = jnp.where(ts == 0, 0.0, jnp.roll(sv, 1, axis=0))      # pair t-1
        p_next = jnp.where(ts == h - 1, 0.0, jnp.roll(sv, -1, axis=0))  # pair t+1
        parts += [p_prev, sv, p_next]

    op1 = jnp.concatenate(parts, axis=-1).astype(bf16)
    acc1 = jnp.dot(op1, b1_ref[...], preferred_element_type=f32)
    y1 = jnp.maximum(acc1 * aff_ref[0:1, :] + aff_ref[1:2, :], 0.0)   # (rows, 2L)

    # ---- conv2 operand:  [ y1[2t-1] | y1[2t] | y1[2t+1] | y1[2t+2] ] ----
    # lane slices at 0 / 128 are vreg-aligned (free); rolls give the +/-1 pair.
    tm = pair_idx((rows, lanes))
    m0 = jnp.where(tm == 0, 0.0, jnp.roll(y1[:, lanes:], 1, axis=0))      # 2t-1
    m3 = jnp.where(tm == h - 1, 0.0, jnp.roll(y1[:, :lanes], -1, axis=0))  # 2t+2
    op2 = jnp.concatenate([m0, y1, m3], axis=-1).astype(bf16)
    acc2 = jnp.dot(op2, b2_ref[...], preferred_element_type=f32)
    y2 = jnp.maximum(acc2 * aff_ref[2:3, :] + aff_ref[3:4, :], 0.0)

    # lane-dense store: full 256-lane rows, no masked vst, no scratch round trip
    o_ref[...] = y2.reshape(o_ref.shape).astype(o_ref.dtype)


# ---------------------------------------------------------------------------
# Wrapper.
# ---------------------------------------------------------------------------
def _choose_images_per_step(n, h_low, target_rows=256):
    """Stack B images into the matmul M dim, keeping >= 2 grid steps (v7x)."""
    b = max(1, min(n, max(1, target_rows // max(h_low, 1))))
    while b > 1 and (n % b != 0 or n // b < 2):
        b -= 1
    return b


def decoder_block(x, skip, params):
    """DecoderBlock forward, NHWC.

    x:    (N, H, W, in_ch)            float32
    skip: (N, 2H, 2W, skip_ch) or None
    """
    n, h, w, cx = x.shape
    ho, wo = 2 * h, 2 * w
    w1, w2 = params["w1"], params["w2"]
    c1, cout = w1.shape[2], w1.shape[3]
    has_skip = skip is not None
    cs = c1 - cx
    if has_skip:
        assert skip.shape == (n, ho, wo, cs), skip.shape
    else:
        assert cs == 0

    lanes = wo * cout
    lanes2 = 2 * lanes                               # paired output lane width

    # K-stacked banded-matmul form of the two convs (bf16 MXU operands).
    b1 = _conv1_band(w1, cx, w).astype(jnp.bfloat16)      # (3*W*Cin + 6*2W*Cs, 2L)
    b2 = _conv2_band(w2, wo).astype(jnp.bfloat16)         # (4*L, 2L)

    # Folded eval-mode BN affine, pre-tiled to the paired lane layout.
    aff = jnp.stack([jnp.tile(params["scale1"], 2 * wo),
                     jnp.tile(params["shift1"], 2 * wo),
                     jnp.tile(params["scale2"], 2 * wo),
                     jnp.tile(params["shift2"], 2 * wo)]).astype(jnp.float32)

    bimg = _choose_images_per_step(n, h)
    grid = (n // bimg,)

    # Lane-flat / pair-folded views (free reshapes of contiguous NHWC arrays).
    x_flat = x.reshape(n, h, w * cx)
    inputs = [x_flat]
    in_specs = [pl.BlockSpec((bimg, h, w * cx), lambda i: (i, 0, 0))]
    if has_skip:
        inputs.append(skip.reshape(n, h, 2 * wo * cs))        # rows 2t|2t+1 paired
        in_specs.append(pl.BlockSpec((bimg, h, 2 * wo * cs), lambda i: (i, 0, 0)))
    for arr in (b1, b2, aff):                                 # constant-index weights
        inputs.append(arr)
        in_specs.append(pl.BlockSpec(arr.shape, lambda i: (0, 0)))

    out_spec = pl.BlockSpec((bimg, h, lanes2), lambda i: (i, 0, 0))

    flops = 2 * n * h * (b1.shape[0] + b2.shape[0]) * lanes2
    bytes_accessed = (x.size * x.dtype.itemsize
                      + (skip.size * skip.dtype.itemsize if has_skip else 0)
                      + b1.size * 2 + b2.size * 2 + aff.size * 4
                      + n * h * lanes2 * 4)

    # VMEM limit sized to actual need (double-buffered I/O blocks + weights),
    # capped well below every generation's physical VMEM (v7x has only 64 MiB).
    block_bytes = (bimg * h * w * cx * 4
                   + (bimg * h * 2 * wo * cs * 4 if has_skip else 0)
                   + bimg * h * lanes2 * 4)
    weight_bytes = b1.size * 2 + b2.size * 2 + aff.size * 4
    vmem_limit = int(min(32 * 1024 * 1024,
                         max(8 * 1024 * 1024,
                             6 * (2 * block_bytes + 2 * weight_bytes))))

    out_flat = pl.pallas_call(
        functools.partial(_decoder_block_kernel, has_skip=has_skip),
        out_shape=jax.ShapeDtypeStruct((n, h, lanes2), x.dtype),
        grid_spec=pltpu.PrefetchScalarGridSpec(
            num_scalar_prefetch=0,
            grid=grid,
            in_specs=in_specs,
            out_specs=out_spec,
        ),
        compiler_params=pltpu.CompilerParams(
            dimension_semantics=("parallel",),     # batch steps -> both v7x TCs
            vmem_limit_bytes=vmem_limit,
        ),
        cost_estimate=pl.CostEstimate(flops=flops, transcendentals=0,
                                      bytes_accessed=bytes_accessed),
    )(*inputs)

    # (N, h, 2*Wout*Cout) paired rows == (N, 2h, Wout, Cout) by a free reshape.
    return out_flat.reshape(n, ho, wo, cout)


# ---------------------------------------------------------------------------
# Pure-JAX reference (f32 end-to-end) and synthetic parameters.
# ---------------------------------------------------------------------------
def decoder_block_ref(x, skip, params):
    x = jnp.repeat(jnp.repeat(x, 2, axis=1), 2, axis=2)
    if skip is not None:
        x = jnp.concatenate([x, skip], axis=-1)

    def cbr(x, w, scale, shift):
        y = jax.lax.conv_general_dilated(
            x, w, window_strides=(1, 1), padding="SAME",
            dimension_numbers=("NHWC", "HWIO", "NHWC"))
        return jnp.maximum(y * scale[None, None, None, :]
                           + shift[None, None, None, :], 0.0)

    x = cbr(x, params["w1"], params["scale1"], params["shift1"])
    x = cbr(x, params["w2"], params["scale2"], params["shift2"])
    return x


def make_params(key, in_ch, skip_ch, out_ch, eps=1e-5):
    """Deterministic synthetic parameters (conv weights + folded eval-mode BN)."""
    k1, k2, k3, k4, k5, k6 = jax.random.split(key, 6)
    c1_in = in_ch + skip_ch
    w1 = jax.random.normal(k1, (3, 3, c1_in, out_ch), jnp.float32) * 0.1
    w2 = jax.random.normal(k2, (3, 3, out_ch, out_ch), jnp.float32) * 0.1

    def fold_bn(kg, kb, c):
        gamma = 1.0 + 0.1 * jax.random.normal(kg, (c,), jnp.float32)
        beta = 0.1 * jax.random.normal(kb, (c,), jnp.float32)
        running_mean = 0.05 * jnp.arange(c, dtype=jnp.float32)
        running_var = 1.0 + 0.01 * jnp.arange(c, dtype=jnp.float32)
        scale = gamma * jax.lax.rsqrt(running_var + eps)
        shift = beta - running_mean * scale
        return scale, shift

    scale1, shift1 = fold_bn(k3, k4, out_ch)
    scale2, shift2 = fold_bn(k5, k6, out_ch)
    return {"w1": w1, "scale1": scale1, "shift1": shift1,
            "w2": w2, "scale2": scale2, "shift2": shift2}


if __name__ == "__main__":
    # batch=8, in_ch=4, skip_ch=4, out_ch=8, low-res 8x8 -> output 16x16.
    # Paired output lane width = 2*16*8 = 256; 4 images stacked per grid step
    # (M = 32 rows), 2 parallel grid steps.
    N, IN_CH, SKIP_CH, OUT_CH, H, W = 8, 4, 4, 8, 8, 8

    key = jax.random.PRNGKey(0)
    kx, ks, kp = jax.random.split(key, 3)
    x = jax.random.normal(kx, (N, H, W, IN_CH), jnp.float32)            # NHWC
    skip = jax.random.normal(ks, (N, 2 * H, 2 * W, SKIP_CH), jnp.float32)
    params = make_params(kp, IN_CH, SKIP_CH, OUT_CH)

    out = jax.jit(decoder_block)(x, skip, params)
    out = jax.block_until_ready(out)

    ref = decoder_block_ref(x, skip, params)
    assert out.shape == (N, 2 * H, 2 * W, OUT_CH), out.shape
    max_err = float(jnp.max(jnp.abs(out - ref)))
    # bf16 MXU operands with f32 accumulation -> looser tolerance than pure f32.
    assert jnp.allclose(out, ref, atol=3e-2, rtol=3e-2), (
        f"mismatch vs reference, max abs err {max_err}")

    print("KERNEL_OK")
</pallas_src>

<mosaic_0001>
module attributes {stable_mosaic.version = 11 : i64} {
  func.func @_decoder_block_kernel(%arg0: i32, %arg1: memref<4x8x32xf32, #tpu.memory_space<vmem>>, %arg2: memref<4x8x128xf32, #tpu.memory_space<vmem>>, %arg3: memref<480x256xbf16, #tpu.memory_space<vmem>>, %arg4: memref<512x256xbf16, #tpu.memory_space<vmem>>, %arg5: memref<4x256xf32, #tpu.memory_space<vmem>>, %arg6: memref<4x8x256xf32, #tpu.memory_space<vmem>>) attributes {dimension_semantics = [#tpu.dimension_semantics<parallel>], iteration_bounds = array<i64: 2>, scalar_prefetch = 0 : i64, scratch_operands = 0 : i64, tpu.core_type = #tpu.core_type<tc>, window_params = [{transform_indices = @transform_0, window_bounds = array<i64: 4, 8, 32>}, {transform_indices = @transform_1, window_bounds = array<i64: 4, 8, 128>}, {pipeline_mode = #tpu.pipeline_mode<synchronous>, transform_indices = @transform_2, window_bounds = array<i64: 480, 256>}, {pipeline_mode = #tpu.pipeline_mode<synchronous>, transform_indices = @transform_3, window_bounds = array<i64: 512, 256>}, {pipeline_mode = #tpu.pipeline_mode<synchronous>, transform_indices = @transform_4, window_bounds = array<i64: 4, 256>}, {transform_indices = @transform_5, window_bounds = array<i64: 4, 8, 256>}]} {
    %c0 = arith.constant 0 : index
    %c0_0 = arith.constant 0 : index
    %c0_1 = arith.constant 0 : index
    %0 = vector.load %arg1[%c0, %c0_0, %c0_1] : memref<4x8x32xf32, #tpu.memory_space<vmem>>, vector<4x8x32xf32>
    %1 = vector.shape_cast %0 : vector<4x8x32xf32> to vector<32x32xf32>
    %2 = tpu.iota {dimensions = array<i32: 0>} : vector<32x32xi32>
    %c8_i32 = arith.constant 8 : i32
    %c0_i32 = arith.constant 0 : i32
    %3 = arith.cmpi eq, %c8_i32, %c0_i32 : i32
    %c1_i32 = arith.constant 1 : i32
    %4 = arith.select %3, %c1_i32, %c8_i32 : i32
    %5 = vector.broadcast %4 : i32 to vector<32x32xi32>
    %6 = arith.remsi %2, %5 : vector<32x32xi32>
    %c0_i32_2 = arith.constant 0 : i32
    %7 = vector.broadcast %c0_i32_2 : i32 to vector<32x32xi32>
    %8 = arith.cmpi ne, %6, %7 : vector<32x32xi32>
    %c0_i32_3 = arith.constant 0 : i32
    %9 = vector.broadcast %c0_i32_3 : i32 to vector<32x32xi32>
    %10 = arith.cmpi slt, %6, %9 : vector<32x32xi32>
    %c0_i32_4 = arith.constant 0 : i32
    %11 = arith.cmpi slt, %4, %c0_i32_4 : i32
    %12 = vector.broadcast %11 : i1 to vector<32x32xi1>
    %13 = vector.broadcast %12 : vector<32x32xi1> to vector<32x32xi1>
    %14 = arith.xori %10, %13 : vector<32x32xi1>
    %15 = arith.andi %14, %8 : vector<32x32xi1>
    %16 = vector.broadcast %4 : i32 to vector<32x32xi32>
    %17 = arith.addi %6, %16 : vector<32x32xi32>
    %18 = arith.select %15, %17, %6 : vector<32x32xi1>, vector<32x32xi32>
    %c0_i32_5 = arith.constant 0 : i32
    %19 = vector.broadcast %c0_i32_5 : i32 to vector<32x32xi32>
    %20 = arith.cmpi eq, %18, %19 : vector<32x32xi32>
    %21 = vector.extract_strided_slice %1 {offsets = [31, 0], sizes = [1, 32], strides = [1, 1]} : vector<32x32xf32> to vector<1x32xf32>
    %22 = vector.extract_strided_slice %1 {offsets = [0, 0], sizes = [31, 32], strides = [1, 1]} : vector<32x32xf32> to vector<31x32xf32>
    %23 = tpu.concatenate %21, %22 in 0 : vector<1x32xf32>, vector<31x32xf32> -> vector<32x32xf32>
    %cst = arith.constant 0.000000e+00 : f32
    %24 = vector.broadcast %cst : f32 to vector<32x32xf32>
    %25 = arith.select %20, %24, %23 : vector<32x32xi1>, vector<32x32xf32>
    %c7_i32 = arith.constant 7 : i32
    %26 = vector.broadcast %c7_i32 : i32 to vector<32x32xi32>
    %27 = arith.cmpi eq, %18, %26 : vector<32x32xi32>
    %28 = vector.extract_strided_slice %1 {offsets = [1, 0], sizes = [31, 32], strides = [1, 1]} : vector<32x32xf32> to vector<31x32xf32>
    %29 = vector.extract_strided_slice %1 {offsets = [0, 0], sizes = [1, 32], strides = [1, 1]} : vector<32x32xf32> to vector<1x32xf32>
    %30 = tpu.concatenate %28, %29 in 0 : vector<31x32xf32>, vector<1x32xf32> -> vector<32x32xf32>
    %cst_6 = arith.constant 0.000000e+00 : f32
    %31 = vector.broadcast %cst_6 : f32 to vector<32x32xf32>
    %32 = arith.select %27, %31, %30 : vector<32x32xi1>, vector<32x32xf32>
    %c0_7 = arith.constant 0 : index
    %c0_8 = arith.constant 0 : index
    %c0_9 = arith.constant 0 : index
    %33 = vector.load %arg2[%c0_7, %c0_8, %c0_9] : memref<4x8x128xf32, #tpu.memory_space<vmem>>, vector<4x8x128xf32>
    %34 = vector.shape_cast %33 : vector<4x8x128xf32> to vector<32x128xf32>
    %35 = tpu.iota {dimensions = array<i32: 0>} : vector<32x128xi32>
    %c8_i32_10 = arith.constant 8 : i32
    %c0_i32_11 = arith.constant 0 : i32
    %36 = arith.cmpi eq, %c8_i32_10, %c0_i32_11 : i32
    %c1_i32_12 = arith.constant 1 : i32
    %37 = arith.select %36, %c1_i32_12, %c8_i32_10 : i32
    %38 = vector.broadcast %37 : i32 to vector<32x128xi32>
    %39 = arith.remsi %35, %38 : vector<32x128xi32>
    %c0_i32_13 = arith.constant 0 : i32
    %40 = vector.broadcast %c0_i32_13 : i32 to vector<32x128xi32>
    %41 = arith.cmpi ne, %39, %40 : vector<32x128xi32>
    %c0_i32_14 = arith.constant 0 : i32
    %42 = vector.broadcast %c0_i32_14 : i32 to vector<32x128xi32>
    %43 = arith.cmpi slt, %39, %42 : vector<32x128xi32>
    %c0_i32_15 = arith.constant 0 : i32
    %44 = arith.cmpi slt, %37, %c0_i32_15 : i32
    %45 = vector.broadcast %44 : i1 to vector<32x128xi1>
    %46 = vector.broadcast %45 : vector<32x128xi1> to vector<32x128xi1>
    %47 = arith.xori %43, %46 : vector<32x128xi1>
    %48 = arith.andi %47, %41 : vector<32x128xi1>
    %49 = vector.broadcast %37 : i32 to vector<32x128xi32>
    %50 = arith.addi %39, %49 : vector<32x128xi32>
    %51 = arith.select %48, %50, %39 : vector<32x128xi1>, vector<32x128xi32>
    %c0_i32_16 = arith.constant 0 : i32
    %52 = vector.broadcast %c0_i32_16 : i32 to vector<32x128xi32>
    %53 = arith.cmpi eq, %51, %52 : vector<32x128xi32>
    %54 = vector.extract_strided_slice %34 {offsets = [31, 0], sizes = [1, 128], strides = [1, 1]} : vector<32x128xf32> to vector<1x128xf32>
    %55 = vector.extract_strided_slice %34 {offsets = [0, 0], sizes = [31, 128], strides = [1, 1]} : vector<32x128xf32> to vector<31x128xf32>
    %56 = tpu.concatenate %54, %55 in 0 : vector<1x128xf32>, vector<31x128xf32> -> vector<32x128xf32>
    %cst_17 = arith.constant 0.000000e+00 : f32
    %57 = vector.broadcast %cst_17 : f32 to vector<32x128xf32>
    %58 = arith.select %53, %57, %56 : vector<32x128xi1>, vector<32x128xf32>
    %c7_i32_18 = arith.constant 7 : i32
    %59 = vector.broadcast %c7_i32_18 : i32 to vector<32x128xi32>
    %60 = arith.cmpi eq, %51, %59 : vector<32x128xi32>
    %61 = vector.extract_strided_slice %34 {offsets = [1, 0], sizes = [31, 128], strides = [1, 1]} : vector<32x128xf32> to vector<31x128xf32>
    %62 = vector.extract_strided_slice %34 {offsets = [0, 0], sizes = [1, 128], strides = [1, 1]} : vector<32x128xf32> to vector<1x128xf32>
    %63 = tpu.concatenate %61, %62 in 0 : vector<31x128xf32>, vector<1x128xf32> -> vector<32x128xf32>
    %cst_19 = arith.constant 0.000000e+00 : f32
    %64 = vector.broadcast %cst_19 : f32 to vector<32x128xf32>
    %65 = arith.select %60, %64, %63 : vector<32x128xi1>, vector<32x128xf32>
    %66 = tpu.concatenate %25, %1, %32, %58, %34, %65 in 1 : vector<32x32xf32>, vector<32x32xf32>, vector<32x32xf32>, vector<32x128xf32>, vector<32x128xf32>, vector<32x128xf32> -> vector<32x480xf32>
    %67 = arith.truncf %66 : vector<32x480xf32> to vector<32x480xbf16>
    %c0_20 = arith.constant 0 : index
    %c0_21 = arith.constant 0 : index
    %68 = vector.load %arg3[%c0_20, %c0_21] : memref<480x256xbf16, #tpu.memory_space<vmem>>, vector<480x256xbf16>
    %cst_22 = arith.constant dense<0.000000e+00> : vector<32x256xf32>
    %69 = tpu.matmul %67, %68, %cst_22 {dimension_numbers = #tpu.dot_dimension_numbers<[1], [0], [0], [1], [0, 0, 1, 1], [], []>} : vector<32x480xbf16>, vector<480x256xbf16>, vector<32x256xf32> -> vector<32x256xf32>
    %c0_23 = arith.constant 0 : index
    %c0_24 = arith.constant 0 : index
    %70 = vector.load %arg5[%c0_23, %c0_24] : memref<4x256xf32, #tpu.memory_space<vmem>>, vector<1x256xf32>
    %71 = vector.broadcast %70 : vector<1x256xf32> to vector<32x256xf32>
    %72 = arith.mulf %69, %71 : vector<32x256xf32>
    %c1 = arith.constant 1 : index
    %c0_25 = arith.constant 0 : index
    %73 = vector.load %arg5[%c1, %c0_25] : memref<4x256xf32, #tpu.memory_space<vmem>>, vector<1x256xf32>
    %74 = vector.broadcast %73 : vector<1x256xf32> to vector<32x256xf32>
    %75 = arith.addf %72, %74 : vector<32x256xf32>
    %cst_26 = arith.constant 0.000000e+00 : f32
    %76 = vector.broadcast %cst_26 : f32 to vector<32x256xf32>
    %77 = arith.maximumf %75, %76 : vector<32x256xf32>
    %78 = tpu.iota {dimensions = array<i32: 0>} : vector<32x128xi32>
    %c8_i32_27 = arith.constant 8 : i32
    %c0_i32_28 = arith.constant 0 : i32
    %79 = arith.cmpi eq, %c8_i32_27, %c0_i32_28 : i32
    %c1_i32_29 = arith.constant 1 : i32
    %80 = arith.select %79, %c1_i32_29, %c8_i32_27 : i32
    %81 = vector.broadcast %80 : i32 to vector<32x128xi32>
    %82 = arith.remsi %78, %81 : vector<32x128xi32>
    %c0_i32_30 = arith.constant 0 : i32
    %83 = vector.broadcast %c0_i32_30 : i32 to vector<32x128xi32>
    %84 = arith.cmpi ne, %82, %83 : vector<32x128xi32>
    %c0_i32_31 = arith.constant 0 : i32
    %85 = vector.broadcast %c0_i32_31 : i32 to vector<32x128xi32>
    %86 = arith.cmpi slt, %82, %85 : vector<32x128xi32>
    %c0_i32_32 = arith.constant 0 : i32
    %87 = arith.cmpi slt, %80, %c0_i32_32 : i32
    %88 = vector.broadcast %87 : i1 to vector<32x128xi1>
    %89 = vector.broadcast %88 : vector<32x128xi1> to vector<32x128xi1>
    %90 = arith.xori %86, %89 : vector<32x128xi1>
    %91 = arith.andi %90, %84 : vector<32x128xi1>
    %92 = vector.broadcast %80 : i32 to vector<32x128xi32>
    %93 = arith.addi %82, %92 : vector<32x128xi32>
    %94 = arith.select %91, %93, %82 : vector<32x128xi1>, vector<32x128xi32>
    %c0_i32_33 = arith.constant 0 : i32
    %95 = vector.broadcast %c0_i32_33 : i32 to vector<32x128xi32>
    %96 = arith.cmpi eq, %94, %95 : vector<32x128xi32>
    %97 = vector.extract_strided_slice %77 {offsets = [0, 128], sizes = [32, 128], strides = [1, 1]} : vector<32x256xf32> to vector<32x128xf32>
    %98 = vector.extract_strided_slice %97 {offsets = [31, 0], sizes = [1, 128], strides = [1, 1]} : vector<32x128xf32> to vector<1x128xf32>
    %99 = vector.extract_strided_slice %97 {offsets = [0, 0], sizes = [31, 128], strides = [1, 1]} : vector<32x128xf32> to vector<31x128xf32>
    %100 = tpu.concatenate %98, %99 in 0 : vector<1x128xf32>, vector<31x128xf32> -> vector<32x128xf32>
    %cst_34 = arith.constant 0.000000e+00 : f32
    %101 = vector.broadcast %cst_34 : f32 to vector<32x128xf32>
    %102 = arith.select %96, %101, %100 : vector<32x128xi1>, vector<32x128xf32>
    %c7_i32_35 = arith.constant 7 : i32
    %103 = vector.broadcast %c7_i32_35 : i32 to vector<32x128xi32>
    %104 = arith.cmpi eq, %94, %103 : vector<32x128xi32>
    %105 = vector.extract_strided_slice %77 {offsets = [0, 0], sizes = [32, 128], strides = [1, 1]} : vector<32x256xf32> to vector<32x128xf32>
    %106 = vector.extract_strided_slice %105 {offsets = [1, 0], sizes = [31, 128], strides = [1, 1]} : vector<32x128xf32> to vector<31x128xf32>
    %107 = vector.extract_strided_slice %105 {offsets = [0, 0], sizes = [1, 128], strides = [1, 1]} : vector<32x128xf32> to vector<1x128xf32>
    %108 = tpu.concatenate %106, %107 in 0 : vector<31x128xf32>, vector<1x128xf32> -> vector<32x128xf32>
    %cst_36 = arith.constant 0.000000e+00 : f32
    %109 = vector.broadcast %cst_36 : f32 to vector<32x128xf32>
    %110 = arith.select %104, %109, %108 : vector<32x128xi1>, vector<32x128xf32>
    %111 = tpu.concatenate %102, %77, %110 in 1 : vector<32x128xf32>, vector<32x256xf32>, vector<32x128xf32> -> vector<32x512xf32>
    %112 = arith.truncf %111 : vector<32x512xf32> to vector<32x512xbf16>
    %c0_37 = arith.constant 0 : index
    %c0_38 = arith.constant 0 : index
    %113 = vector.load %arg4[%c0_37, %c0_38] : memref<512x256xbf16, #tpu.memory_space<vmem>>, vector<512x256xbf16>
    %cst_39 = arith.constant dense<0.000000e+00> : vector<32x256xf32>
    %114 = tpu.matmul %112, %113, %cst_39 {dimension_numbers = #tpu.dot_dimension_numbers<[1], [0], [0], [1], [0, 0, 1, 1], [], []>} : vector<32x512xbf16>, vector<512x256xbf16>, vector<32x256xf32> -> vector<32x256xf32>
    %c2 = arith.constant 2 : index
    %c0_40 = arith.constant 0 : index
    %115 = vector.load %arg5[%c2, %c0_40] : memref<4x256xf32, #tpu.memory_space<vmem>>, vector<1x256xf32>
    %116 = vector.broadcast %115 : vector<1x256xf32> to vector<32x256xf32>
    %117 = arith.mulf %114, %116 : vector<32x256xf32>
    %c3 = arith.constant 3 : index
    %c0_41 = arith.constant 0 : index
    %118 = vector.load %arg5[%c3, %c0_41] : memref<4x256xf32, #tpu.memory_space<vmem>>, vector<1x256xf32>
    %119 = vector.broadcast %118 : vector<1x256xf32> to vector<32x256xf32>
    %120 = arith.addf %117, %119 : vector<32x256xf32>
    %cst_42 = arith.constant 0.000000e+00 : f32
    %121 = vector.broadcast %cst_42 : f32 to vector<32x256xf32>
    %122 = arith.maximumf %120, %121 : vector<32x256xf32>
    %123 = vector.shape_cast %122 : vector<32x256xf32> to vector<4x8x256xf32>
    %c0_43 = arith.constant 0 : index
    %c0_44 = arith.constant 0 : index
    %c0_45 = arith.constant 0 : index
    %124 = vector.load %arg6[%c0_43, %c0_44, %c0_45] : memref<4x8x256xf32, #tpu.memory_space<vmem>>, vector<4x8x256xf32>
    tpu.vector_store %arg6[%c0_43, %c0_44, %c0_45], %123 {strides = array<i32>} : memref<4x8x256xf32, #tpu.memory_space<vmem>>, vector<4x8x256xf32>,
    return
  }
  func.func @transform_0(%arg0: i32) -> (i32, i32, i32) {
    %c0_i32 = arith.constant 0 : i32
    %c0_i32_0 = arith.constant 0 : i32
    %c0_i32_1 = arith.constant 0 : i32
    return %arg0, %c0_i32, %c0_i32_0 : i32, i32, i32
  }
  func.func @transform_1(%arg0: i32) -> (i32, i32, i32) {
    %c0_i32 = arith.constant 0 : i32
    %c0_i32_0 = arith.constant 0 : i32
    %c0_i32_1 = arith.constant 0 : i32
    return %arg0, %c0_i32, %c0_i32_0 : i32, i32, i32
  }
  func.func @transform_2(%arg0: i32) -> (i32, i32) {
    %c0_i32 = arith.constant 0 : i32
    %c0_i32_0 = arith.constant 0 : i32
    %c0_i32_1 = arith.constant 0 : i32
    return %c0_i32, %c0_i32_0 : i32, i32
  }
  func.func @transform_3(%arg0: i32) -> (i32, i32) {
    %c0_i32 = arith.constant 0 : i32
    %c0_i32_0 = arith.constant 0 : i32
    %c0_i32_1 = arith.constant 0 : i32
    return %c0_i32, %c0_i32_0 : i32, i32
  }
  func.func @transform_4(%arg0: i32) -> (i32, i32) {
    %c0_i32 = arith.constant 0 : i32
    %c0_i32_0 = arith.constant 0 : i32
    %c0_i32_1 = arith.constant 0 : i32
    return %c0_i32, %c0_i32_0 : i32, i32
  }
  func.func @transform_5(%arg0: i32) -> (i32, i32, i32) {
    %c0_i32 = arith.constant 0 : i32
    %c0_i32_0 = arith.constant 0 : i32
    %c0_i32_1 = arith.constant 0 : i32
    return %arg0, %c0_i32, %c0_i32_0 : i32, i32, i32
  }
}

</mosaic_0001>

<llo_original>
// kernel: tile.23
$region0: #{tile.23}
  #allocation0 [shape = 's32[1]{0}', space=sflag, size = 0x4, scoped, tag = 'scoped memory for tile.23']
  %s0 = inlined_call_operand.vmem [shape: f32[8], index: 0, kind: input, shape index: {}]
  %s1 = inlined_call_operand.vmem [shape: f32[32,8], index: 1, kind: output, shape index: {}]
  // Predicated region
  $region2: #{tile.23} parent=0 // pred_check
    _
  $region3: #{tile.23} parent=0 // pred_check_branch
    %3 = sbr.rel (0) target = $region5
  $region4: #{tile.23} parent=0 // pred_region
    _
  $region5: #{tile.23} parent=0 // pred_fallthru
    _
  %v4 = vld [vmem:[%s0] ss:$0 sm:$0xff]
  %5 = vst [vmem:[%s1] sm:$0xff] %v4
  %s6 = scalar_lea.vmem %s1, 8
  %7 = vst [vmem:[%s6] sm:$0xff] %v4
  %s8 = scalar_lea.vmem %s1, 16
  %9 = vst [vmem:[%s8] sm:$0xff] %v4
  %s10 = scalar_lea.vmem %s1, 24
  %11 = vst [vmem:[%s10] sm:$0xff] %v4

// kernel: tile.36
$region0: #{tile.36}
  %s0 = inlined_call_operand.vmem [shape: f32[32,8], index: 0, kind: input, shape index: {}]
  %s1 = inlined_call_operand.vmem [shape: f32[1,256], index: 1, kind: output, shape index: {}]
  $region1: #{tile.36} parent=0
    #allocation0 [shape = 'u8[8192]{0}', space=vmem, size = 0x2000, scoped, tag = 'scoped mem for output reshape']
    %s2 = smov 3
    %v3 = vld [vmem:[%s0] ss:$16 sm:%s2]
    %vm4 = vcmask 64512
    %5 = vst.msk [vmem:[#allocation0] ss:$8 sm:$0x3] %vm4, %v3
    %s6 = scalar_lea.vmem %s0, 15
    %s7 = smov 3
    %v8 = vld [vmem:[%s6] ss:$16 sm:%s7]
    %9 = vrot.lane.b32.xlu0 %v8, 120
    %v10 = vpop.permute.xlu0 %9
    %vm11 = vcmask 1048512
    %12 = vst.msk [vmem:[#allocation0] ss:$8 sm:$0x3] %vm11, %v10
    %s13 = scalar_lea.vmem %s0, 14
    %s14 = smov 3
    %v15 = vld [vmem:[%s13] ss:$16 sm:%s14]
    %16 = vrot.lane.b32.xlu0 %v15, 112
    %v17 = vpop.permute.xlu0 %16
    %vm18 = vcmask 982912
    %19 = vst.msk [vmem:[#allocation0] ss:$8 sm:$0x3] %vm18, %v17
    %s20 = scalar_lea.vmem %s0, 13
    %s21 = smov 3
    %v22 = vld [vmem:[%s20] ss:$16 sm:%s21]
    %23 = vrot.lane.b32.xlu0 %v22, 104
    %v24 = vpop.permute.xlu0 %23
    %vm25 = vcmask 917312
    %26 = vst.msk [vmem:[#allocation0] ss:$8 sm:$0x3] %vm25, %v24
    %s27 = scalar_lea.vmem %s0, 12
    %s28 = smov 3
    %v29 = vld [vmem:[%s27] ss:$16 sm:%s28]
    %30 = vrot.lane.b32.xlu0 %v29, 96
    %v31 = vpop.permute.xlu0 %30
    %vm32 = vcmask 851712
    %33 = vst.msk [vmem:[#allocation0] ss:$8 sm:$0x3] %vm32, %v31
    %s34 = scalar_lea.vmem %s0, 11
    %s35 = smov 3
    %v36 = vld [vmem:[%s34] ss:$16 sm:%s35]
    %37 = vrot.lane.b32.xlu0 %v36, 88
    %v38 = vpop.permute.xlu0 %37
    %vm39 = vcmask 786112
    %40 = vst.msk [vmem:[#allocation0] ss:$8 sm:$0x3] %vm39, %v38
    %s41 = scalar_lea.vmem %s0, 10
    %s42 = smov 3
    %v43 = vld [vmem:[%s41] ss:$16 sm:%s42]
    %44 = vrot.lane.b32.xlu0 %v43, 80
    %v45 = vpop.permute.xlu0 %44
    %vm46 = vcmask 720512
    %47 = vst.msk [vmem:[#allocation0] ss:$8 sm:$0x3] %vm46, %v45
    %s48 = scalar_lea.vmem %s0, 9
    %s49 = smov 3
    %v50 = vld [vmem:[%s48] ss:$16 sm:%s49]
    %51 = vrot.lane.b32.xlu0 %v50, 72
    %v52 = vpop.permute.xlu0 %51
    %vm53 = vcmask 654912
    %54 = vst.msk [vmem:[#allocation0] ss:$8 sm:$0x3] %vm53, %v52
    %s55 = scalar_lea.vmem %s0, 8
    %s56 = smov 3
    %v57 = vld [vmem:[%s55] ss:$16 sm:%s56]
    %58 = vrot.lane.b32.xlu0 %v57, 64
    %v59 = vpop.permute.xlu0 %58
    %vm60 = vcmask 589312
    %61 = vst.msk [vmem:[#allocation0] ss:$8 sm:$0x3] %vm60, %v59
    %s62 = scalar_lea.vmem %s0, 7
    %s63 = smov 3
    %v64 = vld [vmem:[%s62] ss:$16 sm:%s63]
    %65 = vrot.lane.b32.xlu0 %v64, 56
    %v66 = vpop.permute.xlu0 %65
    %vm67 = vcmask 523712
    %68 = vst.msk [vmem:[#allocation0] ss:$8 sm:$0x3] %vm67, %v66
    %s69 = scalar_lea.vmem %s0, 6
    %s70 = smov 3
    %v71 = vld [vmem:[%s69] ss:$16 sm:%s70]
    %72 = vrot.lane.b32.xlu0 %v71, 48
    %v73 = vpop.permute.xlu0 %72
    %vm74 = vcmask 458112
    %75 = vst.msk [vmem:[#allocation0] ss:$8 sm:$0x3] %vm74, %v73
    %s76 = scalar_lea.vmem %s0, 5
    %s77 = smov 3
    %v78 = vld [vmem:[%s76] ss:$16 sm:%s77]
    %79 = vrot.lane.b32.xlu0 %v78, 40
    %v80 = vpop.permute.xlu0 %79
    %vm81 = vcmask 392512
    %82 = vst.msk [vmem:[#allocation0] ss:$8 sm:$0x3] %vm81, %v80
    %s83 = scalar_lea.vmem %s0, 4
    %s84 = smov 3
    %v85 = vld [vmem:[%s83] ss:$16 sm:%s84]
    %86 = vrot.lane.b32.xlu0 %v85, 32
    %v87 = vpop.permute.xlu0 %86
    %vm88 = vcmask 326912
    %89 = vst.msk [vmem:[#allocation0] ss:$8 sm:$0x3] %vm88, %v87
    %s90 = scalar_lea.vmem %s0, 3
    %s91 = smov 3
    %v92 = vld [vmem:[%s90] ss:$16 sm:%s91]
    %93 = vrot.lane.b32.xlu0 %v92, 24
    %v94 = vpop.permute.xlu0 %93
    %vm95 = vcmask 261312
    %96 = vst.msk [vmem:[#allocation0] ss:$8 sm:$0x3] %vm95, %v94
    %s97 = scalar_lea.vmem %s0, 2
    %s98 = smov 3
    %v99 = vld [vmem:[%s97] ss:$16 sm:%s98]
    %100 = vrot.lane.b32.xlu0 %v99, 16
    %v101 = vpop.permute.xlu0 %100
    %vm102 = vcmask 195712
    %103 = vst.msk [vmem:[#allocation0] ss:$8 sm:$0x3] %vm102, %v101
    %s104 = scalar_lea.vmem %s0, 1
    %s105 = smov 3
    %v106 = vld [vmem:[%s104] ss:$16 sm:%s105]
    %107 = vrot.lane.b32.xlu0 %v106, 8
    %v108 = vpop.permute.xlu0 %107
    %vm109 = vcmask 130112
    %110 = vst.msk [vmem:[#allocation0] ss:$8 sm:$0x3] %vm109, %v108
    %s112 = sshllo.u32 0, 1
    %v114 = vld [vmem:[#allocation0] sm:%s112]
    %s115 = sshllo.u32 0, 1
    %116 = vst [vmem:[%s1] sm:%s115] %v114
    %s117 = scalar_lea.vmem [#allocation0], 8
    %v118 = vld [vmem:[%s117] sm:%s112]
    %s119 = sshllo.u32 0, 1
    %s120 = scalar_lea.vmem %s1, 1
    %121 = vst [vmem:[%s120] sm:%s119] %v118

// kernel: decoder_block.1
$region0: #{decoder_block.1}
  #allocation0 [shape = 'u32[]', space=smem, size = 0x4, offset = 0x4, fixed_abs, tag = 'smem constant byte address 0x4 - core index']
  #allocation1 [shape = 'u32[144,128]{1,0:T(1,128)}', space=vmem, size = 0x12000, scoped, tag = 'internal scratch']
  %s0 = inlined_call_operand.vmem [shape: f32[8,8,32], index: 0, kind: input, shape index: {}]
  %s1 = inlined_call_operand.vmem [shape: f32[8,8,128], index: 1, kind: input, shape index: {}]
  %s2 = inlined_call_operand.vmem [shape: bf16[480,256], index: 2, kind: input, shape index: {}]
  %s3 = inlined_call_operand.vmem [shape: bf16[512,256], index: 3, kind: input, shape index: {}]
  %s4 = inlined_call_operand.vmem [shape: f32[4,256], index: 4, kind: input, shape index: {}]
  %s5 = inlined_call_operand.vmem [shape: f32[8,8,256], index: 5, kind: output, shape index: {}]
  %s6 = sld [smem:[#allocation0]]
  $region53: #{decoder_block.1} parent=0
    _
  %s8 = ssub.s32 1, %s6
  %s9 = scalar_select 0, %s8, %s6
  loop: start=0, step=1, limit=4
  $region2: #{decoder_block.1} parent=0 // loop_pre_header
    _
  $region3: #{decoder_block.1} parent=0 // loop_header
    %s11 = sphi 0, %s15
    %p12 = scmp.ge.s32.totalorder %s11, 4
    %s21 = sphi 0, %s23
    %s24 = sphi 0, %s21
    %s25 = sphi 0, %s24
    %s41 = sphi 0, %s25
    %s47 = sphi 0, %s49
    %s50 = sphi 0, %s47
    %s51 = sphi 0, %s50
    %s67 = sphi 0, %s51
    %s71 = sphi 0, %s71
    %s73 = sphi 0, %s71
    %s74 = sphi 0, %s73
    %s88 = sphi 0, %s74
    %s92 = sphi 0, %s92
    %s94 = sphi 0, %s92
    %s95 = sphi 0, %s94
    %s109 = sphi 0, %s95
    %s113 = sphi 0, %s113
    %s115 = sphi 0, %s113
    %s116 = sphi 0, %s115
    %s130 = sphi 0, %s116
    %s136 = sphi 0, %s138
    %s139 = sphi 0, %s136
    %s140 = sphi 0, %s139
    %s156 = sphi 0, %s140
  $region4: #{decoder_block.1} parent=0 // loop_header_branch
    %14 = sbr.rel (%p12) target = $region8
  $region5: #{decoder_block.1} parent=0 // loop_body
    %s16 = ssub.s32 %s11, 1
    %s17 = ssub.s32 %s11, 2
    %s18 = sadd.s32 %s11, 1
    %s19 = ssub.s32 %s11, %s18
    %p20 = scmp.eq.s32.totalorder %s19, 0
    %s22 = sadd.s32 %s21, 1
    %s23 = scalar_select %p20, %s21, %s22
    %p26 = pneg %p20
    %p27 = scmp.eq.s32.totalorder %s11, 1
    %p28 = por %p26, %p27
    %p29 = scmp.ne.s32.totalorder %s21, %s24
    %p30 = scmp.eq.s32.totalorder %s11, 0
    %p31 = por %p29, %p30
    %p32 = scmp.ne.s32.totalorder %s21, %s24
    %p33 = scmp.eq.s32.totalorder %s16, 1
    %p34 = por %p32, %p33
    %p35 = scmp.ne.s32.totalorder %s24, %s25
    %p36 = scmp.eq.s32.totalorder %s16, 0
    %p37 = por %p35, %p36
    %p38 = scmp.ne.s32.totalorder %s24, %s25
    %p39 = scmp.eq.s32.totalorder %s17, 1
    %p40 = por %p38, %p39
    %p42 = scmp.ne.s32.totalorder %s25, %s41
    %p43 = scmp.eq.s32.totalorder %s17, 0
    %p44 = por %p42, %p43
    %s45 = ssub.s32 %s11, %s18
    %p46 = scmp.eq.s32.totalorder %s45, 0
    %s48 = sadd.s32 %s47, 1
    %s49 = scalar_select %p46, %s47, %s48
    %p52 = pneg %p46
    %p53 = scmp.eq.s32.totalorder %s11, 1
    %p54 = por %p52, %p53
    %p55 = scmp.ne.s32.totalorder %s47, %s50
    %p56 = scmp.eq.s32.totalorder %s11, 0
    %p57 = por %p55, %p56
    %p58 = scmp.ne.s32.totalorder %s47, %s50
    %p59 = scmp.eq.s32.totalorder %s16, 1
    %p60 = por %p58, %p59
    %p61 = scmp.ne.s32.totalorder %s50, %s51
    %p62 = scmp.eq.s32.totalorder %s16, 0
    %p63 = por %p61, %p62
    %p64 = scmp.ne.s32.totalorder %s50, %s51
    %p65 = scmp.eq.s32.totalorder %s17, 1
    %p66 = por %p64, %p65
    %p68 = scmp.ne.s32.totalorder %s51, %s67
    %p69 = scmp.eq.s32.totalorder %s17, 0
    %p70 = por %p68, %p69
    %s72 = sadd.s32 %s71, 1
    %p75 = scmp.eq.s32.totalorder %s11, 1
    %p76 = scmp.ne.s32.totalorder %s71, %s73
    %p77 = scmp.eq.s32.totalorder %s11, 0
    %p78 = por %p76, %p77
    %p79 = scmp.ne.s32.totalorder %s71, %s73
    %p80 = scmp.eq.s32.totalorder %s16, 1
    %p81 = por %p79, %p80
    %p82 = scmp.ne.s32.totalorder %s73, %s74
    %p83 = scmp.eq.s32.totalorder %s16, 0
    %p84 = por %p82, %p83
    %p85 = scmp.ne.s32.totalorder %s73, %s74
    %p86 = scmp.eq.s32.totalorder %s17, 1
    %p87 = por %p85, %p86
    %p89 = scmp.ne.s32.totalorder %s74, %s88
    %p90 = scmp.eq.s32.totalorder %s17, 0
    %p91 = por %p89, %p90
    %s93 = sadd.s32 %s92, 1
    %p96 = scmp.eq.s32.totalorder %s11, 1
    %p97 = scmp.ne.s32.totalorder %s92, %s94
    %p98 = scmp.eq.s32.totalorder %s11, 0
    %p99 = por %p97, %p98
    %p100 = scmp.ne.s32.totalorder %s92, %s94
    %p101 = scmp.eq.s32.totalorder %s16, 1
    %p102 = por %p100, %p101
    %p103 = scmp.ne.s32.totalorder %s94, %s95
    %p104 = scmp.eq.s32.totalorder %s16, 0
    %p105 = por %p103, %p104
    %p106 = scmp.ne.s32.totalorder %s94, %s95
    %p107 = scmp.eq.s32.totalorder %s17, 1
    %p108 = por %p106, %p107
    %p110 = scmp.ne.s32.totalorder %s95, %s109
    %p111 = scmp.eq.s32.totalorder %s17, 0
    %p112 = por %p110, %p111
    %s114 = sadd.s32 %s113, 1
    %p117 = scmp.eq.s32.totalorder %s11, 1
    %p118 = scmp.ne.s32.totalorder %s113, %s115
    %p119 = scmp.eq.s32.totalorder %s11, 0
    %p120 = por %p118, %p119
    %p121 = scmp.ne.s32.totalorder %s113, %s115
    %p122 = scmp.eq.s32.totalorder %s16, 1
    %p123 = por %p121, %p122
    %p124 = scmp.ne.s32.totalorder %s115, %s116
    %p125 = scmp.eq.s32.totalorder %s16, 0
    %p126 = por %p124, %p125
    %p127 = scmp.ne.s32.totalorder %s115, %s116
    %p128 = scmp.eq.s32.totalorder %s17, 1
    %p129 = por %p127, %p128
    %p131 = scmp.ne.s32.totalorder %s116, %s130
    %p132 = scmp.eq.s32.totalorder %s17, 0
    %p133 = por %p131, %p132
    %s134 = ssub.s32 %s11, %s18
    %p135 = scmp.eq.s32.totalorder %s134, 0
    %s137 = sadd.s32 %s136, 1
    %s138 = scalar_select %p135, %s136, %s137
    %p141 = pneg %p135
    %p142 = scmp.eq.s32.totalorder %s11, 1
    %p143 = por %p141, %p142
    %p144 = scmp.ne.s32.totalorder %s136, %s139
    %p145 = scmp.eq.s32.totalorder %s11, 0
    %p146 = por %p144, %p145
    %p147 = scmp.ne.s32.totalorder %s136, %s139
    %p148 = scmp.eq.s32.totalorder %s16, 1
    %p149 = por %p147, %p148
    %p150 = scmp.ne.s32.totalorder %s139, %s140
    %p151 = scmp.eq.s32.totalorder %s16, 0
    %p152 = por %p150, %p151
    %p153 = scmp.ne.s32.totalorder %s139, %s140
    %p154 = scmp.eq.s32.totalorder %s17, 1
    %p155 = por %p153, %p154
    %p157 = scmp.ne.s32.totalorder %s140, %s156
    %p158 = scmp.eq.s32.totalorder %s17, 0
    %p159 = por %p157, %p158
    %p160 = scmp.le.s32.totalorder 1, %s11
    %p161 = scmp.lt.s32.totalorder %s11, 3
    %p162 = pnand %p160, %p161
    %p163 = pneg %p162
    // Predicated region
    $region9: #{decoder_block.1} parent=5 // pred_check
      _
    $region10: #{decoder_block.1} parent=5 // pred_check_branch
      %165 = sbr.rel (%p162) target = $region12
    $region11: #{decoder_block.1} parent=5 // pred_region
      %s166 = ssub.s32 %s11, 1
      // Predicated region
      $region13: #{decoder_block.1} parent=11 // pred_check
        %p167 = pneg %p84
      $region14: #{decoder_block.1} parent=11 // pred_check_branch
        %169 = sbr.rel (%p167) target = $region16
      $region15: #{decoder_block.1} parent=11 // pred_region
        _
      $region16: #{decoder_block.1} parent=11 // pred_fallthru
        _
      // Predicated region
      $region17: #{decoder_block.1} parent=11 // pred_check
        %p170 = pneg %p105
      $region18: #{decoder_block.1} parent=11 // pred_check_branch
        %172 = sbr.rel (%p170) target = $region20
      $region19: #{decoder_block.1} parent=11 // pred_region
        _
      $region20: #{decoder_block.1} parent=11 // pred_fallthru
        _
      // Predicated region
      $region21: #{decoder_block.1} parent=11 // pred_check
        %p173 = pneg %p126
      $region22: #{decoder_block.1} parent=11 // pred_check_branch
        %175 = sbr.rel (%p173) target = $region24
      $region23: #{decoder_block.1} parent=11 // pred_region
        _
      $region24: #{decoder_block.1} parent=11 // pred_fallthru
        _
    $region12: #{decoder_block.1} parent=5 // pred_fallthru
      _
    %p176 = scmp.lt.s32.totalorder %s11, 2
    // Predicated region
    $region25: #{decoder_block.1} parent=5 // pred_check
      %p177 = pneg %p176
    $region26: #{decoder_block.1} parent=5 // pred_check_branch
      %179 = sbr.rel (%p177) target = $region28
    $region27: #{decoder_block.1} parent=5 // pred_region
      // Predicated region
      $region29: #{decoder_block.1} parent=27 // pred_check
        %p180 = pneg %p31
      $region30: #{decoder_block.1} parent=27 // pred_check_branch
        %182 = sbr.rel (%p180) target = $region32
      $region31: #{decoder_block.1} parent=27 // pred_region
        %s183 = smul.u32 4, %s11
        %p184 = scmp.lt.s32.totalorder %s183, 7
        %s185 = scalar_select %p184, %s183, 7
        %s186 = smul.addr %s185, 8
        %s187 = scalar_lea.vmem %s0, %s186
        %s188 = smul.u32 4, %s11
      $region32: #{decoder_block.1} parent=27 // pred_fallthru
        _
      // Predicated region
      $region33: #{decoder_block.1} parent=27 // pred_check
        %p189 = pneg %p57
      $region34: #{decoder_block.1} parent=27 // pred_check_branch
        %191 = sbr.rel (%p189) target = $region36
      $region35: #{decoder_block.1} parent=27 // pred_region
        %s192 = smul.u32 4, %s11
        %p193 = scmp.lt.s32.totalorder %s192, 7
        %s194 = scalar_select %p193, %s192, 7
        %s195 = smul.addr %s194, 8
        %s196 = scalar_lea.vmem %s1, %s195
        %s197 = smul.u32 4, %s11
      $region36: #{decoder_block.1} parent=27 // pred_fallthru
        _
    $region28: #{decoder_block.1} parent=5 // pred_fallthru
      _
    %p198 = scmp.le.s32.totalorder 1, %s11
    %p199 = scmp.lt.s32.totalorder %s11, 3
    %p200 = pnand %p198, %p199
    %p201 = pneg %p200
    // Predicated region
    $region37: #{decoder_block.1} parent=5 // pred_check
      _
    $region38: #{decoder_block.1} parent=5 // pred_check_branch
      %203 = sbr.rel (%p200) target = $region40
    $region39: #{decoder_block.1} parent=5 // pred_region
      %s204 = ssub.s32 %s11, 1
      %s205 = smul.u32 4, %s16
      %p206 = scmp.lt.s32.totalorder %s205, 7
      %s207 = scalar_select %p206, %s205, 7
      %s208 = smul.addr %s207, 8
      %s209 = scalar_lea.vmem %s0, %s208
      %p210 = pneg %p37
      %p211 = pneg %p34
      %s212 = smul.u32 4, %s16
      %p213 = scmp.lt.s32.totalorder %s212, 7
      %s214 = scalar_select %p213, %s212, 7
      %s215 = smul.addr %s214, 8
      %s216 = scalar_lea.vmem %s1, %s215
      %p217 = pneg %p63
      %p218 = pneg %p60
      %p219 = pneg %p84
      %p220 = pneg %p81
      %p221 = pneg %p105
      %p222 = pneg %p102
      %p223 = pneg %p126
      %p224 = pneg %p123
      %p225 = pneg %p152
      %p226 = pneg %p149
      %s227 = smul.u32 4, %s16
      %p228 = scmp.lt.s32.totalorder %s227, 7
      %s229 = scalar_select %p228, %s227, 7
      %s230 = smul.addr %s229, 2
      %s231 = smul.addr %s230, 8
      %s232 = scalar_lea.vmem %s5, %s231
      %s233 = smul.u32 4, %s16
      %p234 = scmp.lt.s32.totalorder %s233, 7
      %s235 = scalar_select %p234, %s233, 7
      %s236 = smul.addr %s235, 8
      %s237 = scalar_lea.vmem %s0, %s236
      %s238 = smul.u32 4, %s16
      %s239 = smul.u32 4, %s16
      %p240 = scmp.lt.s32.totalorder %s239, 7
      %s241 = scalar_select %p240, %s239, 7
      %s242 = smul.addr %s241, 8
      %s243 = scalar_lea.vmem %s1, %s242
      %s244 = smul.u32 4, %s16
      %s245 = smul.u32 4, %s16
      %p246 = scmp.lt.s32.totalorder %s245, 7
      %s247 = scalar_select %p246, %s245, 7
      %s248 = smul.addr %s247, 2
      %s249 = smul.addr %s248, 8
      %s250 = scalar_lea.vmem %s5, %s249
      %s251 = smul.u32 4, %s16
      %v253 = vld [vmem:[%s237] sm:$0xff]
      %v254 = vld [vmem:[%s237 + $0x8] sm:$0xff]
      %v255 = vld [vmem:[%s237 + $0x10] sm:$0xff]
      %v256 = vld [vmem:[%s237 + $0x18] sm:$0xff]
      %v257 = vlaneseq
      %v258 = vshrl.u32 %v257, 7
      %v259 = vadd.s32 %v258, 8
      %v260 = vadd.s32 %v258, 16
      %v261 = vadd.s32 %v258, 24
      %vm262 = vcmp.lt.s32.totalorder %v258, 0
      %v263 = vsub.s32 0, %v258
      %v264 = vsel %vm262, %v263, %v258
      %v265 = vshrl.u32 %v264, 3
      %v266 = vand.u32 %v264, 7
      %v267 = vsub.s32 0, %v266
      %v268 = vsel %vm262, %v267, %v266
      %vm269 = vcmp.lt.s32.totalorder %v259, 0
      %v270 = vsub.s32 0, %v259
      %v271 = vsel %vm269, %v270, %v259
      %v272 = vshrl.u32 %v271, 3
      %v273 = vand.u32 %v271, 7
      %v274 = vsub.s32 0, %v273
      %v275 = vsel %vm269, %v274, %v273
      %vm276 = vcmp.lt.s32.totalorder %v260, 0
      %v277 = vsub.s32 0, %v260
      %v278 = vsel %vm276, %v277, %v260
      %v279 = vshrl.u32 %v278, 3
      %v280 = vand.u32 %v278, 7
      %v281 = vsub.s32 0, %v280
      %v282 = vsel %vm276, %v281, %v280
      %vm283 = vcmp.lt.s32.totalorder %v261, 0
      %v284 = vsub.s32 0, %v261
      %v285 = vsel %vm283, %v284, %v261
      %v286 = vshrl.u32 %v285, 3
      %v287 = vand.u32 %v285, 7
      %v288 = vsub.s32 0, %v287
      %v289 = vsel %vm283, %v288, %v287
      %vm290 = vcmp.ne.s32.totalorder %v268, 0
      %vm291 = vcmp.ne.s32.totalorder %v275, 0
      %vm292 = vcmp.ne.s32.totalorder %v282, 0
      %vm293 = vcmp.ne.s32.totalorder %v289, 0
      %vm294 = vcmp.lt.s32.totalorder %v268, 0
      %vm295 = vcmp.lt.s32.totalorder %v275, 0
      %vm296 = vcmp.lt.s32.totalorder %v282, 0
      %vm297 = vcmp.lt.s32.totalorder %v289, 0
      %vm298 = vmand %vm294, %vm290
      %vm299 = vmand %vm295, %vm291
      %vm300 = vmand %vm296, %vm292
      %vm301 = vmand %vm297, %vm293
      %v302 = vadd.s32 %v268, 8
      %v303 = vadd.s32 %v275, 8
      %v304 = vadd.s32 %v282, 8
      %v305 = vadd.s32 %v289, 8
      %v306 = vsel %vm298, %v302, %v268
      %v307 = vsel %vm299, %v303, %v275
      %v308 = vsel %vm300, %v304, %v282
      %v309 = vsel %vm301, %v305, %v289
      %vm310 = vcmp.eq.s32.totalorder %v306, 0
      %vm311 = vcmp.eq.s32.totalorder %v307, 0
      %vm312 = vcmp.eq.s32.totalorder %v308, 0
      %vm313 = vcmp.eq.s32.totalorder %v309, 0
      %v315 = vrot.slane %v256, 7
      %vm320 = vcmask 1040384
      %v321 = vrot.slane %v253, 7
      %v322 = vrot.slane %v254, 7
      %v323 = vsel %vm320, %v321, %v322
      %v324 = vrot.slane %v255, 7
      %v325 = vsel %vm320, %v322, %v324
      %v326 = vsel %vm320, %v324, %v315
      %v331 = vsel %vm320, %v315, %v321
      %v332 = vsel %vm310, 0.0, %v331
      %v333 = vsel %vm311, 0.0, %v323
      %v334 = vsel %vm312, 0.0, %v325
      %v335 = vsel %vm313, 0.0, %v326
      %vm336 = vcmp.eq.s32.totalorder %v306, 7
      %vm337 = vcmp.eq.s32.totalorder %v307, 7
      %vm338 = vcmp.eq.s32.totalorder %v308, 7
      %vm339 = vcmp.eq.s32.totalorder %v309, 7
      %vm340 = vcmask 1046528
      %v341 = vrot.slane %v253, 1
      %v342 = vrot.slane %v254, 1
      %v343 = vsel %vm340, %v341, %v342
      %v344 = vrot.slane %v255, 1
      %v345 = vsel %vm340, %v342, %v344
      %v346 = vrot.slane %v256, 1
      %v347 = vsel %vm340, %v344, %v346
      %v353 = vsel %vm340, %v346, %v341
      %v354 = vsel %vm336, 0.0, %v343
      %v355 = vsel %vm337, 0.0, %v345
      %v356 = vsel %vm338, 0.0, %v347
      %v357 = vsel %vm339, 0.0, %v353
      %v358 = vld [vmem:[%s243] sm:$0xff]
      %v359 = vld [vmem:[%s243 + $0x8] sm:$0xff]
      %v360 = vld [vmem:[%s243 + $0x10] sm:$0xff]
      %v361 = vld [vmem:[%s243 + $0x18] sm:$0xff]
      %v363 = vrot.slane %v361, 7
      %v368 = vrot.slane %v358, 7
      %v369 = vrot.slane %v359, 7
      %v370 = vsel %vm320, %v368, %v369
      %v371 = vrot.slane %v360, 7
      %v372 = vsel %vm320, %v369, %v371
      %v373 = vsel %vm320, %v371, %v363
      %v378 = vsel %vm320, %v363, %v368
      %v379 = vsel %vm310, 0.0, %v378
      %v380 = vsel %vm311, 0.0, %v370
      %v381 = vsel %vm312, 0.0, %v372
      %v382 = vsel %vm313, 0.0, %v373
      %v383 = vrot.slane %v358, 1
      %v384 = vrot.slane %v359, 1
      %v385 = vsel %vm340, %v383, %v384
      %v386 = vrot.slane %v360, 1
      %v387 = vsel %vm340, %v384, %v386
      %v388 = vrot.slane %v361, 1
      %v389 = vsel %vm340, %v386, %v388
      %v395 = vsel %vm340, %v388, %v383
      %v396 = vsel %vm336, 0.0, %v385
      %v397 = vsel %vm337, 0.0, %v387
      %v398 = vsel %vm338, 0.0, %v389
      %v399 = vsel %vm339, 0.0, %v395
      %400 = vrot.lane.b32.xlu0 %v253, 32
      %v401 = vpop.permute.xlu0 %400
      %402 = vrot.lane.b32.xlu0 %v254, 32
      %v403 = vpop.permute.xlu0 %402
      %404 = vrot.lane.b32.xlu0 %v255, 32
      %v405 = vpop.permute.xlu0 %404
      %406 = vrot.lane.b32.xlu0 %v256, 32
      %v407 = vpop.permute.xlu0 %406
      %416 = vrot.lane.b32.xlu0 %v354, 64
      %v417 = vpop.permute.xlu0 %416
      %418 = vrot.lane.b32.xlu0 %v355, 64
      %v419 = vpop.permute.xlu0 %418
      %420 = vrot.lane.b32.xlu0 %v356, 64
      %v421 = vpop.permute.xlu0 %420
      %422 = vrot.lane.b32.xlu0 %v357, 64
      %v423 = vpop.permute.xlu0 %422
      %432 = vrot.lane.b32.xlu0 %v379, 96
      %v433 = vpop.permute.xlu0 %432
      %434 = vrot.lane.b32.xlu0 %v380, 96
      %v435 = vpop.permute.xlu0 %434
      %436 = vrot.lane.b32.xlu0 %v381, 96
      %v437 = vpop.permute.xlu0 %436
      %438 = vrot.lane.b32.xlu0 %v382, 96
      %v439 = vpop.permute.xlu0 %438
      %444 = vrot.lane.b32.xlu0 %v358, 96
      %v445 = vpop.permute.xlu0 %444
      %446 = vrot.lane.b32.xlu0 %v359, 96
      %v447 = vpop.permute.xlu0 %446
      %448 = vrot.lane.b32.xlu0 %v360, 96
      %v449 = vpop.permute.xlu0 %448
      %450 = vrot.lane.b32.xlu0 %v361, 96
      %v451 = vpop.permute.xlu0 %450
      %460 = vrot.lane.b32.xlu0 %v396, 96
      %v461 = vpop.permute.xlu0 %460
      %462 = vrot.lane.b32.xlu0 %v397, 96
      %v463 = vpop.permute.xlu0 %462
      %464 = vrot.lane.b32.xlu0 %v398, 96
      %v465 = vpop.permute.xlu0 %464
      %466 = vrot.lane.b32.xlu0 %v399, 96
      %v467 = vpop.permute.xlu0 %466
      %vm472 = vcmask 261120
      %v473 = vsel %vm472, %v332, %v401
      %v474 = vsel %vm472, %v333, %v403
      %v475 = vsel %vm472, %v334, %v405
      %v476 = vsel %vm472, %v335, %v407
      %vm477 = vcmask 523264
      %v478 = vsel %vm477, %v473, %v417
      %v479 = vsel %vm477, %v474, %v419
      %v480 = vsel %vm477, %v475, %v421
      %v481 = vsel %vm477, %v476, %v423
      %vm482 = vcmask 785408
      %v483 = vsel %vm482, %v478, %v433
      %v484 = vsel %vm482, %v479, %v435
      %v485 = vsel %vm482, %v480, %v437
      %v486 = vsel %vm482, %v481, %v439
      %v487 = vsel %vm482, %v433, %v445
      %v488 = vsel %vm482, %v435, %v447
      %v489 = vsel %vm482, %v437, %v449
      %v490 = vsel %vm482, %v439, %v451
      %v491 = vsel %vm482, %v445, %v461
      %v492 = vsel %vm482, %v447, %v463
      %v493 = vsel %vm482, %v449, %v465
      %v494 = vsel %vm482, %v451, %v467
      %v495 = vpack.c.bf16 %v484, %v483
      %v496 = vpack.c.bf16 %v488, %v487
      %v497 = vpack.c.bf16 %v492, %v491
      %v498 = vpack.c.bf16 %v463, %v461
      %v499 = vpack.c.bf16 %v486, %v485
      %v500 = vpack.c.bf16 %v490, %v489
      %v501 = vpack.c.bf16 %v494, %v493
      %v502 = vpack.c.bf16 %v467, %v465
      %v503 = vld [vmem:[%s2] sm:$0xff]
      %v504 = vld [vmem:[%s2 + $0x8] sm:$0xff]
      %v505 = vld [vmem:[%s2 + $0x10] sm:$0xff]
      %v506 = vld [vmem:[%s2 + $0x18] sm:$0xff]
      %v507 = vld [vmem:[%s2 + $0x20] sm:$0xff]
      %v508 = vld [vmem:[%s2 + $0x28] sm:$0xff]
      %v509 = vld [vmem:[%s2 + $0x30] sm:$0xff]
      %v510 = vld [vmem:[%s2 + $0x38] sm:$0xff]
      %v511 = vld [vmem:[%s2 + $0x40] sm:$0xff]
      %v512 = vld [vmem:[%s2 + $0x48] sm:$0xff]
      %v513 = vld [vmem:[%s2 + $0x50] sm:$0xff]
      %v514 = vld [vmem:[%s2 + $0x58] sm:$0xff]
      %v515 = vld [vmem:[%s2 + $0x60] sm:$0xff]
      %v516 = vld [vmem:[%s2 + $0x68] sm:$0xff]
      %v517 = vld [vmem:[%s2 + $0x70] sm:$0xff]
      %v518 = vld [vmem:[%s2 + $0x78] sm:$0xff]
      %v519 = vld [vmem:[%s2 + $0x80] sm:$0xff]
      %v520 = vld [vmem:[%s2 + $0x88] sm:$0xff]
      %v521 = vld [vmem:[%s2 + $0x90] sm:$0xff]
      %v522 = vld [vmem:[%s2 + $0x98] sm:$0xff]
      %v523 = vld [vmem:[%s2 + $0xa0] sm:$0xff]
      %v524 = vld [vmem:[%s2 + $0xa8] sm:$0xff]
      %v525 = vld [vmem:[%s2 + $0xb0] sm:$0xff]
      %v526 = vld [vmem:[%s2 + $0xb8] sm:$0xff]
      %v527 = vld [vmem:[%s2 + $0xc0] sm:$0xff]
      %v528 = vld [vmem:[%s2 + $0xc8] sm:$0xff]
      %v529 = vld [vmem:[%s2 + $0xd0] sm:$0xff]
      %v530 = vld [vmem:[%s2 + $0xd8] sm:$0xff]
      %v531 = vld [vmem:[%s2 + $0xe0] sm:$0xff]
      %v532 = vld [vmem:[%s2 + $0xe8] sm:$0xff]
      %v533 = vld [vmem:[%s2 + $0xf0] sm:$0xff]
      %v534 = vld [vmem:[%s2 + $0xf8] sm:$0xff]
      %v535 = vld [vmem:[%s2 + $0x100] sm:$0xff]
      %v536 = vld [vmem:[%s2 + $0x108] sm:$0xff]
      %v537 = vld [vmem:[%s2 + $0x110] sm:$0xff]
      %v538 = vld [vmem:[%s2 + $0x118] sm:$0xff]
      %v539 = vld [vmem:[%s2 + $0x120] sm:$0xff]
      %v540 = vld [vmem:[%s2 + $0x128] sm:$0xff]
      %v541 = vld [vmem:[%s2 + $0x130] sm:$0xff]
      %v542 = vld [vmem:[%s2 + $0x138] sm:$0xff]
      %v543 = vld [vmem:[%s2 + $0x140] sm:$0xff]
      %v544 = vld [vmem:[%s2 + $0x148] sm:$0xff]
      %v545 = vld [vmem:[%s2 + $0x150] sm:$0xff]
      %v546 = vld [vmem:[%s2 + $0x158] sm:$0xff]
      %v547 = vld [vmem:[%s2 + $0x160] sm:$0xff]
      %v548 = vld [vmem:[%s2 + $0x168] sm:$0xff]
      %v549 = vld [vmem:[%s2 + $0x170] sm:$0xff]
      %v550 = vld [vmem:[%s2 + $0x178] sm:$0xff]
      %v551 = vld [vmem:[%s2 + $0x180] sm:$0xff]
      %v552 = vld [vmem:[%s2 + $0x188] sm:$0xff]
      %v553 = vld [vmem:[%s2 + $0x190] sm:$0xff]
      %v554 = vld [vmem:[%s2 + $0x198] sm:$0xff]
      %v555 = vld [vmem:[%s2 + $0x1a0] sm:$0xff]
      %v556 = vld [vmem:[%s2 + $0x1a8] sm:$0xff]
      %v557 = vld [vmem:[%s2 + $0x1b0] sm:$0xff]
      %v558 = vld [vmem:[%s2 + $0x1b8] sm:$0xff]
      %v559 = vld [vmem:[%s2 + $0x1c0] sm:$0xff]
      %v560 = vld [vmem:[%s2 + $0x1c8] sm:$0xff]
      %v561 = vld [vmem:[%s2 + $0x1d0] sm:$0xff]
      %v562 = vld [vmem:[%s2 + $0x1d8] sm:$0xff]
      %v623 = vunpack.c.l.b16 %v503
      %v624 = vunpack.c.h.b16 %v503
      %v625 = vunpack.c.l.b16 %v504
      %v626 = vunpack.c.h.b16 %v504
      %v627 = vunpack.c.l.b16 %v505
      %v628 = vunpack.c.h.b16 %v505
      %v629 = vunpack.c.l.b16 %v506
      %v630 = vunpack.c.h.b16 %v506
      %v631 = vunpack.c.l.b16 %v507
      %v632 = vunpack.c.h.b16 %v507
      %v633 = vunpack.c.l.b16 %v508
      %v634 = vunpack.c.h.b16 %v508
      %v635 = vunpack.c.l.b16 %v509
      %v636 = vunpack.c.h.b16 %v509
      %v637 = vunpack.c.l.b16 %v510
      %v638 = vunpack.c.h.b16 %v510
      %v639 = vunpack.c.l.b16 %v511
      %v640 = vunpack.c.h.b16 %v511
      %v641 = vunpack.c.l.b16 %v512
      %v642 = vunpack.c.h.b16 %v512
      %v643 = vunpack.c.l.b16 %v513
      %v644 = vunpack.c.h.b16 %v513
      %v645 = vunpack.c.l.b16 %v514
      %v646 = vunpack.c.h.b16 %v514
      %v647 = vunpack.c.l.b16 %v515
      %v648 = vunpack.c.h.b16 %v515
      %v649 = vunpack.c.l.b16 %v516
      %v650 = vunpack.c.h.b16 %v516
      %v651 = vunpack.c.l.b16 %v517
      %v652 = vunpack.c.h.b16 %v517
      %v653 = vunpack.c.l.b16 %v518
      %v654 = vunpack.c.h.b16 %v518
      %v655 = vunpack.c.l.b16 %v519
      %v656 = vunpack.c.h.b16 %v519
      %v657 = vunpack.c.l.b16 %v520
      %v658 = vunpack.c.h.b16 %v520
      %v659 = vunpack.c.l.b16 %v521
      %v660 = vunpack.c.h.b16 %v521
      %v661 = vunpack.c.l.b16 %v522
      %v662 = vunpack.c.h.b16 %v522
      %v663 = vunpack.c.l.b16 %v523
      %v664 = vunpack.c.h.b16 %v523
      %v665 = vunpack.c.l.b16 %v524
      %v666 = vunpack.c.h.b16 %v524
      %v667 = vunpack.c.l.b16 %v525
      %v668 = vunpack.c.h.b16 %v525
      %v669 = vunpack.c.l.b16 %v526
      %v670 = vunpack.c.h.b16 %v526
      %v671 = vunpack.c.l.b16 %v527
      %v672 = vunpack.c.h.b16 %v527
      %v673 = vunpack.c.l.b16 %v528
      %v674 = vunpack.c.h.b16 %v528
      %v675 = vunpack.c.l.b16 %v529
      %v676 = vunpack.c.h.b16 %v529
      %v677 = vunpack.c.l.b16 %v530
      %v678 = vunpack.c.h.b16 %v530
      %v679 = vunpack.c.l.b16 %v531
      %v680 = vunpack.c.h.b16 %v531
      %v681 = vunpack.c.l.b16 %v532
      %v682 = vunpack.c.h.b16 %v532
      %v683 = vunpack.c.l.b16 %v533
      %v684 = vunpack.c.h.b16 %v533
      %v685 = vunpack.c.l.b16 %v534
      %v686 = vunpack.c.h.b16 %v534
      %v687 = vunpack.c.l.b16 %v535
      %v688 = vunpack.c.h.b16 %v535
      %v689 = vunpack.c.l.b16 %v536
      %v690 = vunpack.c.h.b16 %v536
      %v691 = vunpack.c.l.b16 %v537
      %v692 = vunpack.c.h.b16 %v537
      %v693 = vunpack.c.l.b16 %v538
      %v694 = vunpack.c.h.b16 %v538
      %v695 = vunpack.c.l.b16 %v539
      %v696 = vunpack.c.h.b16 %v539
      %v697 = vunpack.c.l.b16 %v540
      %v698 = vunpack.c.h.b16 %v540
      %v699 = vunpack.c.l.b16 %v541
      %v700 = vunpack.c.h.b16 %v541
      %v701 = vunpack.c.l.b16 %v542
      %v702 = vunpack.c.h.b16 %v542
      %v703 = vunpack.c.l.b16 %v543
      %v704 = vunpack.c.h.b16 %v543
      %v705 = vunpack.c.l.b16 %v544
      %v706 = vunpack.c.h.b16 %v544
      %v707 = vunpack.c.l.b16 %v545
      %v708 = vunpack.c.h.b16 %v545
      %v709 = vunpack.c.l.b16 %v546
      %v710 = vunpack.c.h.b16 %v546
      %v711 = vunpack.c.l.b16 %v547
      %v712 = vunpack.c.h.b16 %v547
      %v713 = vunpack.c.l.b16 %v548
      %v714 = vunpack.c.h.b16 %v548
      %v715 = vunpack.c.l.b16 %v549
      %v716 = vunpack.c.h.b16 %v549
      %v717 = vunpack.c.l.b16 %v550
      %v718 = vunpack.c.h.b16 %v550
      %v719 = vunpack.c.l.b16 %v551
      %v720 = vunpack.c.h.b16 %v551
      %v721 = vunpack.c.l.b16 %v552
      %v722 = vunpack.c.h.b16 %v552
      %v723 = vunpack.c.l.b16 %v553
      %v724 = vunpack.c.h.b16 %v553
      %v725 = vunpack.c.l.b16 %v554
      %v726 = vunpack.c.h.b16 %v554
      %v727 = vunpack.c.l.b16 %v555
      %v728 = vunpack.c.h.b16 %v555
      %v729 = vunpack.c.l.b16 %v556
      %v730 = vunpack.c.h.b16 %v556
      %v731 = vunpack.c.l.b16 %v557
      %v732 = vunpack.c.h.b16 %v557
      %v733 = vunpack.c.l.b16 %v558
      %v734 = vunpack.c.h.b16 %v558
      %v735 = vunpack.c.l.b16 %v559
      %v736 = vunpack.c.h.b16 %v559
      %v737 = vunpack.c.l.b16 %v560
      %v738 = vunpack.c.h.b16 %v560
      %v739 = vunpack.c.l.b16 %v561
      %v740 = vunpack.c.h.b16 %v561
      %v741 = vunpack.c.l.b16 %v562
      %v742 = vunpack.c.h.b16 %v562
      %v743 = vpack.c.b16 %v625, %v623
      %v744 = vpack.c.b16 %v626, %v624
      %v745 = vpack.c.b16 %v629, %v627
      %v746 = vpack.c.b16 %v630, %v628
      %v747 = vpack.c.b16 %v633, %v631
      %v748 = vpack.c.b16 %v634, %v632
      %v749 = vpack.c.b16 %v637, %v635
      %v750 = vpack.c.b16 %v638, %v636
      %v751 = vpack.c.b16 %v641, %v639
      %v752 = vpack.c.b16 %v642, %v640
      %v753 = vpack.c.b16 %v645, %v643
      %v754 = vpack.c.b16 %v646, %v644
      %v755 = vpack.c.b16 %v649, %v647
      %v756 = vpack.c.b16 %v650, %v648
      %v757 = vpack.c.b16 %v653, %v651
      %v758 = vpack.c.b16 %v654, %v652
      %v759 = vpack.c.b16 %v657, %v655
      %v760 = vpack.c.b16 %v658, %v656
      %v761 = vpack.c.b16 %v661, %v659
      %v762 = vpack.c.b16 %v662, %v660
      %v763 = vpack.c.b16 %v665, %v663
      %v764 = vpack.c.b16 %v666, %v664
      %v765 = vpack.c.b16 %v669, %v667
      %v766 = vpack.c.b16 %v670, %v668
      %v767 = vpack.c.b16 %v673, %v671
      %v768 = vpack.c.b16 %v674, %v672
      %v769 = vpack.c.b16 %v677, %v675
      %v770 = vpack.c.b16 %v678, %v676
      %v771 = vpack.c.b16 %v681, %v679
      %v772 = vpack.c.b16 %v682, %v680
      %v773 = vpack.c.b16 %v685, %v683
      %v774 = vpack.c.b16 %v686, %v684
      %v775 = vpack.c.b16 %v689, %v687
      %v776 = vpack.c.b16 %v690, %v688
      %v777 = vpack.c.b16 %v693, %v691
      %v778 = vpack.c.b16 %v694, %v692
      %v779 = vpack.c.b16 %v697, %v695
      %v780 = vpack.c.b16 %v698, %v696
      %v781 = vpack.c.b16 %v701, %v699
      %v782 = vpack.c.b16 %v702, %v700
      %v783 = vpack.c.b16 %v705, %v703
      %v784 = vpack.c.b16 %v706, %v704
      %v785 = vpack.c.b16 %v709, %v707
      %v786 = vpack.c.b16 %v710, %v708
      %v787 = vpack.c.b16 %v713, %v711
      %v788 = vpack.c.b16 %v714, %v712
      %v789 = vpack.c.b16 %v717, %v715
      %v790 = vpack.c.b16 %v718, %v716
      %v791 = vpack.c.b16 %v721, %v719
      %v792 = vpack.c.b16 %v722, %v720
      %v793 = vpack.c.b16 %v725, %v723
      %v794 = vpack.c.b16 %v726, %v724
      %v795 = vpack.c.b16 %v729, %v727
      %v796 = vpack.c.b16 %v730, %v728
      %v797 = vpack.c.b16 %v733, %v731
      %v798 = vpack.c.b16 %v734, %v732
      %v799 = vpack.c.b16 %v737, %v735
      %v800 = vpack.c.b16 %v738, %v736
      %v801 = vpack.c.b16 %v741, %v739
      %v802 = vpack.c.b16 %v742, %v740
      %v864 = vsel %vm482, %v498, 0
      %v867 = vsel %vm482, %v502, 0
      %869 = vmatprep.subr.bf16.mxu0 %v744
      %870 = vmatpush1.bf16.msra.mxu0 %v743
      %871 = vmatprep.subr.bf16.mxu0 %v746
      %872 = vmatpush1.bf16.msra.mxu0 %v745
      %873 = vmatprep.subr.bf16.mxu0 %v748
      %874 = vmatpush1.bf16.msra.mxu0 %v747
      %875 = vmatprep.subr.bf16.mxu0 %v750
      %876 = vmatpush1.bf16.msra.mxu0 %v749
      %877 = vmatprep.subr.bf16.mxu0 %v752
      %878 = vmatpush1.bf16.msra.mxu0 %v751
      %879 = vmatprep.subr.bf16.mxu0 %v754
      %880 = vmatpush1.bf16.msra.mxu0 %v753
      %881 = vmatprep.subr.bf16.mxu0 %v756
      %882 = vmatpush1.bf16.msra.mxu0 %v755
      %883 = vmatprep.subr.bf16.mxu0 %v758
      %884 = vmatpush1.bf16.msra.mxu0 %v757
      %885 = vmatprep.subr.bf16.mxu0 %v760
      %886 = vmatpush1.bf16.msra.mxu0 %v759
      %887 = vmatprep.subr.bf16.mxu0 %v762
      %888 = vmatpush1.bf16.msra.mxu0 %v761
      %889 = vmatprep.subr.bf16.mxu0 %v764
      %890 = vmatpush1.bf16.msra.mxu0 %v763
      %891 = vmatprep.subr.bf16.mxu0 %v766
      %892 = vmatpush1.bf16.msra.mxu0 %v765
      %893 = vmatprep.subr.bf16.mxu0 %v768
      %894 = vmatpush1.bf16.msra.mxu0 %v767
      %895 = vmatprep.subr.bf16.mxu0 %v770
      %896 = vmatpush1.bf16.msra.mxu0 %v769
      %897 = vmatprep.subr.bf16.mxu0 %v772
      %898 = vmatpush1.bf16.msra.mxu0 %v771
      %899 = vmatprep.subr.bf16.mxu0 %v774
      %900 = vmatpush1.bf16.msra.mxu0 %v773
      %901 = vmatprep.mubr.bf16.mxu0 %v496
      %902 = vmatmul.mubr.bf16.gmra.mrb[0].mxu0 %v495
      %v903 = vpop.f32.mrb[0].mxu0
      %v904 = vadd.f32 0.0, %v903
      %v905 = vpop.f32.mrb[0].mxu0
      %v906 = vadd.f32 0.0, %v905
      %v907 = vpop.f32.mrb[0].mxu0
      %v908 = vadd.f32 0.0, %v907
      %v909 = vpop.f32.mrb[0].mxu0
      %v910 = vadd.f32 0.0, %v909
      %911 = vmatprep.mubr.bf16.mxu0 %v500
      %912 = vmatmul.mubr.bf16.gmra.mrb[0].mxu0 %v499
      %v913 = vpop.f32.mrb[0].mxu0
      %v914 = vadd.f32 0.0, %v913
      %v915 = vpop.f32.mrb[0].mxu0
      %v916 = vadd.f32 0.0, %v915
      %v917 = vpop.f32.mrb[0].mxu0
      %v918 = vadd.f32 0.0, %v917
      %v919 = vpop.f32.mrb[0].mxu0
      %v920 = vadd.f32 0.0, %v919
      %921 = vdwg.mxu0
      %922 = vmatprep.subr.bf16.mxu0 %v776
      %923 = vmatpush1.bf16.msra.mxu0 %v775
      %924 = vmatprep.subr.bf16.mxu0 %v778
      %925 = vmatpush1.bf16.msra.mxu0 %v777
      %926 = vmatprep.subr.bf16.mxu0 %v780
      %927 = vmatpush1.bf16.msra.mxu0 %v779
      %928 = vmatprep.subr.bf16.mxu0 %v782
      %929 = vmatpush1.bf16.msra.mxu0 %v781
      %930 = vmatprep.subr.bf16.mxu0 %v784
      %931 = vmatpush1.bf16.msra.mxu0 %v783
      %932 = vmatprep.subr.bf16.mxu0 %v786
      %933 = vmatpush1.bf16.msra.mxu0 %v785
      %934 = vmatprep.subr.bf16.mxu0 %v788
      %935 = vmatpush1.bf16.msra.mxu0 %v787
      %936 = vmatprep.subr.bf16.mxu0 %v790
      %937 = vmatpush1.bf16.msra.mxu0 %v789
      %938 = vmatprep.subr.bf16.mxu0 %v792
      %939 = vmatpush1.bf16.msra.mxu0 %v791
      %940 = vmatprep.subr.bf16.mxu0 %v794
      %941 = vmatpush1.bf16.msra.mxu0 %v793
      %942 = vmatprep.subr.bf16.mxu0 %v796
      %943 = vmatpush1.bf16.msra.mxu0 %v795
      %944 = vmatprep.subr.bf16.mxu0 %v798
      %945 = vmatpush1.bf16.msra.mxu0 %v797
      %946 = vmatprep.subr.bf16.mxu0 %v800
      %947 = vmatpush1.bf16.msra.mxu0 %v799
      %948 = vmatprep.subr.bf16.mxu0 %v802
      %949 = vmatpush1.bf16.msra.mxu0 %v801
      %950 = vmatprep.subr.bf16.mxu0 0
      %951 = vmatpush1.bf16.msra.mxu0 0
      %952 = vmatprep.subr.bf16.mxu0 0
      %953 = vmatpush1.bf16.msra.mxu0 0
      %954 = vmatprep.mubr.bf16.mxu0 %v864
      %955 = vmatmul.mubr.bf16.gmra.mrb[0].mxu0 %v497
      %v956 = vpop.f32.mrb[0].mxu0
      %v957 = vadd.f32 %v904, %v956
      %v958 = vpop.f32.mrb[0].mxu0
      %v959 = vadd.f32 %v906, %v958
      %v960 = vpop.f32.mrb[0].mxu0
      %v961 = vadd.f32 %v908, %v960
      %v962 = vpop.f32.mrb[0].mxu0
      %v963 = vadd.f32 %v910, %v962
      %964 = vmatprep.mubr.bf16.mxu0 %v867
      %965 = vmatmul.mubr.bf16.gmra.mrb[0].mxu0 %v501
      %v966 = vpop.f32.mrb[0].mxu0
      %v967 = vadd.f32 %v914, %v966
      %v968 = vpop.f32.mrb[0].mxu0
      %v969 = vadd.f32 %v916, %v968
      %v970 = vpop.f32.mrb[0].mxu0
      %v971 = vadd.f32 %v918, %v970
      %v972 = vpop.f32.mrb[0].mxu0
      %v973 = vadd.f32 %v920, %v972
      %974 = vdwg.mxu0
      %v975 = vld [vmem:[%s4] ss:$4 sm:$0x3]
      %v977 = vlaneseq
      %v978 = vshrl.u32 %v977, 7
      %v979 = vsub.s32 0, %v978
      %v980 = vrot.slane %v975, %v979
      %v981 = vlaneseq
      %v982 = vshrl.u32 %v981, 7
      %v983 = vsub.s32 1, %v982
      %v984 = vrot.slane %v975, %v983
      %v987 = vmul.f32 %v957, %v980
      %v988 = vmul.f32 %v959, %v984
      %v989 = vmul.f32 %v961, %v980
      %v990 = vmul.f32 %v963, %v984
      %v991 = vmul.f32 %v967, %v980
      %v992 = vmul.f32 %v969, %v984
      %v993 = vmul.f32 %v971, %v980
      %v994 = vmul.f32 %v973, %v984
      %s995 = scalar_lea.vmem %s4, 1
      %v996 = vld [vmem:[%s995] ss:$4 sm:$0x3]
      %v998 = vlaneseq
      %v999 = vshrl.u32 %v998, 7
      %v1000 = vsub.s32 0, %v999
      %v1001 = vrot.slane %v996, %v1000
      %v1002 = vlaneseq
      %v1003 = vshrl.u32 %v1002, 7
      %v1004 = vsub.s32 1, %v1003
      %v1005 = vrot.slane %v996, %v1004
      %v1008 = vadd.f32 %v987, %v1001
      %v1009 = vadd.f32 %v988, %v1005
      %v1010 = vadd.f32 %v989, %v1001
      %v1011 = vadd.f32 %v990, %v1005
      %v1012 = vadd.f32 %v991, %v1001
      %v1013 = vadd.f32 %v992, %v1005
      %v1014 = vadd.f32 %v993, %v1001
      %v1015 = vadd.f32 %v994, %v1005
      %v1016 = vmax.f32 %v1008, 0.0
      %v1017 = vmax.f32 %v1009, 0.0
      %v1018 = vmax.f32 %v1010, 0.0
      %v1019 = vmax.f32 %v1011, 0.0
      %v1020 = vmax.f32 %v1012, 0.0
      %v1021 = vmax.f32 %v1013, 0.0
      %v1022 = vmax.f32 %v1014, 0.0
      %v1023 = vmax.f32 %v1015, 0.0
      %v1025 = vrot.slane %v1023, 7
      %v1030 = vrot.slane %v1017, 7
      %v1031 = vrot.slane %v1019, 7
      %v1032 = vsel %vm320, %v1030, %v1031
      %v1033 = vrot.slane %v1021, 7
      %v1034 = vsel %vm320, %v1031, %v1033
      %v1035 = vsel %vm320, %v1033, %v1025
      %v1040 = vsel %vm320, %v1025, %v1030
      %v1041 = vsel %vm310, 0.0, %v1040
      %v1042 = vsel %vm311, 0.0, %v1032
      %v1043 = vsel %vm312, 0.0, %v1034
      %v1044 = vsel %vm313, 0.0, %v1035
      %v1049 = vrot.slane %v1016, 1
      %v1050 = vrot.slane %v1018, 1
      %v1051 = vsel %vm340, %v1049, %v1050
      %v1052 = vrot.slane %v1020, 1
      %v1053 = vsel %vm340, %v1050, %v1052
      %v1054 = vrot.slane %v1022, 1
      %v1055 = vsel %vm340, %v1052, %v1054
      %v1061 = vsel %vm340, %v1054, %v1049
      %v1062 = vsel %vm336, 0.0, %v1051
      %v1063 = vsel %vm337, 0.0, %v1053
      %v1064 = vsel %vm338, 0.0, %v1055
      %v1065 = vsel %vm339, 0.0, %v1061
      %v1066 = vpack.c.bf16 %v1042, %v1041
      %v1067 = vpack.c.bf16 %v1018, %v1016
      %v1068 = vpack.c.bf16 %v1019, %v1017
      %v1069 = vpack.c.bf16 %v1063, %v1062
      %v1070 = vpack.c.bf16 %v1044, %v1043
      %v1071 = vpack.c.bf16 %v1022, %v1020
      %v1072 = vpack.c.bf16 %v1023, %v1021
      %v1073 = vpack.c.bf16 %v1065, %v1064
      %v1074 = vld [vmem:[%s3] sm:$0xff]
      %v1075 = vld [vmem:[%s3 + $0x8] sm:$0xff]
      %v1076 = vld [vmem:[%s3 + $0x10] sm:$0xff]
      %v1077 = vld [vmem:[%s3 + $0x18] sm:$0xff]
      %v1078 = vld [vmem:[%s3 + $0x20] sm:$0xff]
      %v1079 = vld [vmem:[%s3 + $0x28] sm:$0xff]
      %v1080 = vld [vmem:[%s3 + $0x30] sm:$0xff]
      %v1081 = vld [vmem:[%s3 + $0x38] sm:$0xff]
      %v1082 = vld [vmem:[%s3 + $0x40] sm:$0xff]
      %v1083 = vld [vmem:[%s3 + $0x48] sm:$0xff]
      %v1084 = vld [vmem:[%s3 + $0x50] sm:$0xff]
      %v1085 = vld [vmem:[%s3 + $0x58] sm:$0xff]
      %v1086 = vld [vmem:[%s3 + $0x60] sm:$0xff]
      %v1087 = vld [vmem:[%s3 + $0x68] sm:$0xff]
      %v1088 = vld [vmem:[%s3 + $0x70] sm:$0xff]
      %v1089 = vld [vmem:[%s3 + $0x78] sm:$0xff]
      %v1090 = vld [vmem:[%s3 + $0x80] sm:$0xff]
      %v1091 = vld [vmem:[%s3 + $0x88] sm:$0xff]
      %v1092 = vld [vmem:[%s3 + $0x90] sm:$0xff]
      %v1093 = vld [vmem:[%s3 + $0x98] sm:$0xff]
      %v1094 = vld [vmem:[%s3 + $0xa0] sm:$0xff]
      %v1095 = vld [vmem:[%s3 + $0xa8] sm:$0xff]
      %v1096 = vld [vmem:[%s3 + $0xb0] sm:$0xff]
      %v1097 = vld [vmem:[%s3 + $0xb8] sm:$0xff]
      %v1098 = vld [vmem:[%s3 + $0xc0] sm:$0xff]
      %v1099 = vld [vmem:[%s3 + $0xc8] sm:$0xff]
      %v1100 = vld [vmem:[%s3 + $0xd0] sm:$0xff]
      %v1101 = vld [vmem:[%s3 + $0xd8] sm:$0xff]
      %v1102 = vld [vmem:[%s3 + $0xe0] sm:$0xff]
      %v1103 = vld [vmem:[%s3 + $0xe8] sm:$0xff]
      %v1104 = vld [vmem:[%s3 + $0xf0] sm:$0xff]
      %v1105 = vld [vmem:[%s3 + $0xf8] sm:$0xff]
      %v1106 = vld [vmem:[%s3 + $0x100] sm:$0xff]
      %v1107 = vld [vmem:[%s3 + $0x108] sm:$0xff]
      %v1108 = vld [vmem:[%s3 + $0x110] sm:$0xff]
      %v1109 = vld [vmem:[%s3 + $0x118] sm:$0xff]
      %v1110 = vld [vmem:[%s3 + $0x120] sm:$0xff]
      %v1111 = vld [vmem:[%s3 + $0x128] sm:$0xff]
      %v1112 = vld [vmem:[%s3 + $0x130] sm:$0xff]
      %v1113 = vld [vmem:[%s3 + $0x138] sm:$0xff]
      %v1114 = vld [vmem:[%s3 + $0x140] sm:$0xff]
      %v1115 = vld [vmem:[%s3 + $0x148] sm:$0xff]
      %v1116 = vld [vmem:[%s3 + $0x150] sm:$0xff]
      %v1117 = vld [vmem:[%s3 + $0x158] sm:$0xff]
      %v1118 = vld [vmem:[%s3 + $0x160] sm:$0xff]
      %v1119 = vld [vmem:[%s3 + $0x168] sm:$0xff]
      %v1120 = vld [vmem:[%s3 + $0x170] sm:$0xff]
      %v1121 = vld [vmem:[%s3 + $0x178] sm:$0xff]
      %v1122 = vld [vmem:[%s3 + $0x180] sm:$0xff]
      %v1123 = vld [vmem:[%s3 + $0x188] sm:$0xff]
      %v1124 = vld [vmem:[%s3 + $0x190] sm:$0xff]
      %v1125 = vld [vmem:[%s3 + $0x198] sm:$0xff]
      %v1126 = vld [vmem:[%s3 + $0x1a0] sm:$0xff]
      %v1127 = vld [vmem:[%s3 + $0x1a8] sm:$0xff]
      %v1128 = vld [vmem:[%s3 + $0x1b0] sm:$0xff]
      %v1129 = vld [vmem:[%s3 + $0x1b8] sm:$0xff]
      %v1130 = vld [vmem:[%s3 + $0x1c0] sm:$0xff]
      %v1131 = vld [vmem:[%s3 + $0x1c8] sm:$0xff]
      %v1132 = vld [vmem:[%s3 + $0x1d0] sm:$0xff]
      %v1133 = vld [vmem:[%s3 + $0x1d8] sm:$0xff]
      %v1134 = vld [vmem:[%s3 + $0x1e0] sm:$0xff]
      %v1135 = vld [vmem:[%s3 + $0x1e8] sm:$0xff]
      %v1136 = vld [vmem:[%s3 + $0x1f0] sm:$0xff]
      %v1137 = vld [vmem:[%s3 + $0x1f8] sm:$0xff]
      %v1202 = vunpack.c.l.b16 %v1074
      %v1203 = vunpack.c.h.b16 %v1074
      %v1204 = vunpack.c.l.b16 %v1075
      %v1205 = vunpack.c.h.b16 %v1075
      %v1206 = vunpack.c.l.b16 %v1076
      %v1207 = vunpack.c.h.b16 %v1076
      %v1208 = vunpack.c.l.b16 %v1077
      %v1209 = vunpack.c.h.b16 %v1077
      %v1210 = vunpack.c.l.b16 %v1078
      %v1211 = vunpack.c.h.b16 %v1078
      %v1212 = vunpack.c.l.b16 %v1079
      %v1213 = vunpack.c.h.b16 %v1079
      %v1214 = vunpack.c.l.b16 %v1080
      %v1215 = vunpack.c.h.b16 %v1080
      %v1216 = vunpack.c.l.b16 %v1081
      %v1217 = vunpack.c.h.b16 %v1081
      %v1218 = vunpack.c.l.b16 %v1082
      %v1219 = vunpack.c.h.b16 %v1082
      %v1220 = vunpack.c.l.b16 %v1083
      %v1221 = vunpack.c.h.b16 %v1083
      %v1222 = vunpack.c.l.b16 %v1084
      %v1223 = vunpack.c.h.b16 %v1084
      %v1224 = vunpack.c.l.b16 %v1085
      %v1225 = vunpack.c.h.b16 %v1085
      %v1226 = vunpack.c.l.b16 %v1086
      %v1227 = vunpack.c.h.b16 %v1086
      %v1228 = vunpack.c.l.b16 %v1087
      %v1229 = vunpack.c.h.b16 %v1087
      %v1230 = vunpack.c.l.b16 %v1088
      %v1231 = vunpack.c.h.b16 %v1088
      %v1232 = vunpack.c.l.b16 %v1089
      %v1233 = vunpack.c.h.b16 %v1089
      %v1234 = vunpack.c.l.b16 %v1090
      %v1235 = vunpack.c.h.b16 %v1090
      %v1236 = vunpack.c.l.b16 %v1091
      %v1237 = vunpack.c.h.b16 %v1091
      %v1238 = vunpack.c.l.b16 %v1092
      %v1239 = vunpack.c.h.b16 %v1092
      %v1240 = vunpack.c.l.b16 %v1093
      %v1241 = vunpack.c.h.b16 %v1093
      %v1242 = vunpack.c.l.b16 %v1094
      %v1243 = vunpack.c.h.b16 %v1094
      %v1244 = vunpack.c.l.b16 %v1095
      %v1245 = vunpack.c.h.b16 %v1095
      %v1246 = vunpack.c.l.b16 %v1096
      %v1247 = vunpack.c.h.b16 %v1096
      %v1248 = vunpack.c.l.b16 %v1097
      %v1249 = vunpack.c.h.b16 %v1097
      %v1250 = vunpack.c.l.b16 %v1098
      %v1251 = vunpack.c.h.b16 %v1098
      %v1252 = vunpack.c.l.b16 %v1099
      %v1253 = vunpack.c.h.b16 %v1099
      %v1254 = vunpack.c.l.b16 %v1100
      %v1255 = vunpack.c.h.b16 %v1100
      %v1256 = vunpack.c.l.b16 %v1101
      %v1257 = vunpack.c.h.b16 %v1101
      %v1258 = vunpack.c.l.b16 %v1102
      %v1259 = vunpack.c.h.b16 %v1102
      %v1260 = vunpack.c.l.b16 %v1103
      %v1261 = vunpack.c.h.b16 %v1103
      %v1262 = vunpack.c.l.b16 %v1104
      %v1263 = vunpack.c.h.b16 %v1104
      %v1264 = vunpack.c.l.b16 %v1105
      %v1265 = vunpack.c.h.b16 %v1105
      %v1266 = vunpack.c.l.b16 %v1106
      %v1267 = vunpack.c.h.b16 %v1106
      %v1268 = vunpack.c.l.b16 %v1107
      %v1269 = vunpack.c.h.b16 %v1107
      %v1270 = vunpack.c.l.b16 %v1108
      %v1271 = vunpack.c.h.b16 %v1108
      %v1272 = vunpack.c.l.b16 %v1109
      %v1273 = vunpack.c.h.b16 %v1109
      %v1274 = vunpack.c.l.b16 %v1110
      %v1275 = vunpack.c.h.b16 %v1110
      %v1276 = vunpack.c.l.b16 %v1111
      %v1277 = vunpack.c.h.b16 %v1111
      %v1278 = vunpack.c.l.b16 %v1112
      %v1279 = vunpack.c.h.b16 %v1112
      %v1280 = vunpack.c.l.b16 %v1113
      %v1281 = vunpack.c.h.b16 %v1113
      %v1282 = vunpack.c.l.b16 %v1114
      %v1283 = vunpack.c.h.b16 %v1114
      %v1284 = vunpack.c.l.b16 %v1115
      %v1285 = vunpack.c.h.b16 %v1115
      %v1286 = vunpack.c.l.b16 %v1116
      %v1287 = vunpack.c.h.b16 %v1116
      %v1288 = vunpack.c.l.b16 %v1117
      %v1289 = vunpack.c.h.b16 %v1117
      %v1290 = vunpack.c.l.b16 %v1118
      %v1291 = vunpack.c.h.b16 %v1118
      %v1292 = vunpack.c.l.b16 %v1119
      %v1293 = vunpack.c.h.b16 %v1119
      %v1294 = vunpack.c.l.b16 %v1120
      %v1295 = vunpack.c.h.b16 %v1120
      %v1296 = vunpack.c.l.b16 %v1121
      %v1297 = vunpack.c.h.b16 %v1121
      %v1298 = vunpack.c.l.b16 %v1122
      %v1299 = vunpack.c.h.b16 %v1122
      %v1300 = vunpack.c.l.b16 %v1123
      %v1301 = vunpack.c.h.b16 %v1123
      %v1302 = vunpack.c.l.b16 %v1124
      %v1303 = vunpack.c.h.b16 %v1124
      %v1304 = vunpack.c.l.b16 %v1125
      %v1305 = vunpack.c.h.b16 %v1125
      %v1306 = vunpack.c.l.b16 %v1126
      %v1307 = vunpack.c.h.b16 %v1126
      %v1308 = vunpack.c.l.b16 %v1127
      %v1309 = vunpack.c.h.b16 %v1127
      %v1310 = vunpack.c.l.b16 %v1128
      %v1311 = vunpack.c.h.b16 %v1128
      %v1312 = vunpack.c.l.b16 %v1129
      %v1313 = vunpack.c.h.b16 %v1129
      %v1314 = vunpack.c.l.b16 %v1130
      %v1315 = vunpack.c.h.b16 %v1130
      %v1316 = vunpack.c.l.b16 %v1131
      %v1317 = vunpack.c.h.b16 %v1131
      %v1318 = vunpack.c.l.b16 %v1132
      %v1319 = vunpack.c.h.b16 %v1132
      %v1320 = vunpack.c.l.b16 %v1133
      %v1321 = vunpack.c.h.b16 %v1133
      %v1322 = vunpack.c.l.b16 %v1134
      %v1323 = vunpack.c.h.b16 %v1134
      %v1324 = vunpack.c.l.b16 %v1135
      %v1325 = vunpack.c.h.b16 %v1135
      %v1326 = vunpack.c.l.b16 %v1136
      %v1327 = vunpack.c.h.b16 %v1136
      %v1328 = vunpack.c.l.b16 %v1137
      %v1329 = vunpack.c.h.b16 %v1137
      %v1330 = vpack.c.b16 %v1204, %v1202
      %v1331 = vpack.c.b16 %v1205, %v1203
      %v1332 = vpack.c.b16 %v1208, %v1206
      %v1333 = vpack.c.b16 %v1209, %v1207
      %v1334 = vpack.c.b16 %v1212, %v1210
      %v1335 = vpack.c.b16 %v1213, %v1211
      %v1336 = vpack.c.b16 %v1216, %v1214
      %v1337 = vpack.c.b16 %v1217, %v1215
      %v1338 = vpack.c.b16 %v1220, %v1218
      %v1339 = vpack.c.b16 %v1221, %v1219
      %v1340 = vpack.c.b16 %v1224, %v1222
      %v1341 = vpack.c.b16 %v1225, %v1223
      %v1342 = vpack.c.b16 %v1228, %v1226
      %v1343 = vpack.c.b16 %v1229, %v1227
      %v1344 = vpack.c.b16 %v1232, %v1230
      %v1345 = vpack.c.b16 %v1233, %v1231
      %v1346 = vpack.c.b16 %v1236, %v1234
      %v1347 = vpack.c.b16 %v1237, %v1235
      %v1348 = vpack.c.b16 %v1240, %v1238
      %v1349 = vpack.c.b16 %v1241, %v1239
      %v1350 = vpack.c.b16 %v1244, %v1242
      %v1351 = vpack.c.b16 %v1245, %v1243
      %v1352 = vpack.c.b16 %v1248, %v1246
      %v1353 = vpack.c.b16 %v1249, %v1247
      %v1354 = vpack.c.b16 %v1252, %v1250
      %v1355 = vpack.c.b16 %v1253, %v1251
      %v1356 = vpack.c.b16 %v1256, %v1254
      %v1357 = vpack.c.b16 %v1257, %v1255
      %v1358 = vpack.c.b16 %v1260, %v1258
      %v1359 = vpack.c.b16 %v1261, %v1259
      %v1360 = vpack.c.b16 %v1264, %v1262
      %v1361 = vpack.c.b16 %v1265, %v1263
      %v1362 = vpack.c.b16 %v1268, %v1266
      %v1363 = vpack.c.b16 %v1269, %v1267
      %v1364 = vpack.c.b16 %v1272, %v1270
      %v1365 = vpack.c.b16 %v1273, %v1271
      %v1366 = vpack.c.b16 %v1276, %v1274
      %v1367 = vpack.c.b16 %v1277, %v1275
      %v1368 = vpack.c.b16 %v1280, %v1278
      %v1369 = vpack.c.b16 %v1281, %v1279
      %v1370 = vpack.c.b16 %v1284, %v1282
      %v1371 = vpack.c.b16 %v1285, %v1283
      %v1372 = vpack.c.b16 %v1288, %v1286
      %v1373 = vpack.c.b16 %v1289, %v1287
      %v1374 = vpack.c.b16 %v1292, %v1290
      %v1375 = vpack.c.b16 %v1293, %v1291
      %v1376 = vpack.c.b16 %v1296, %v1294
      %v1377 = vpack.c.b16 %v1297, %v1295
      %v1378 = vpack.c.b16 %v1300, %v1298
      %v1379 = vpack.c.b16 %v1301, %v1299
      %v1380 = vpack.c.b16 %v1304, %v1302
      %v1381 = vpack.c.b16 %v1305, %v1303
      %v1382 = vpack.c.b16 %v1308, %v1306
      %v1383 = vpack.c.b16 %v1309, %v1307
      %v1384 = vpack.c.b16 %v1312, %v1310
      %v1385 = vpack.c.b16 %v1313, %v1311
      %v1386 = vpack.c.b16 %v1316, %v1314
      %v1387 = vpack.c.b16 %v1317, %v1315
      %v1388 = vpack.c.b16 %v1320, %v1318
      %v1389 = vpack.c.b16 %v1321, %v1319
      %v1390 = vpack.c.b16 %v1324, %v1322
      %v1391 = vpack.c.b16 %v1325, %v1323
      %v1392 = vpack.c.b16 %v1328, %v1326
      %v1393 = vpack.c.b16 %v1329, %v1327
      %1458 = vmatprep.subr.bf16.mxu0 %v1331
      %1459 = vmatpush1.bf16.msra.mxu0 %v1330
      %1460 = vmatprep.subr.bf16.mxu0 %v1333
      %1461 = vmatpush1.bf16.msra.mxu0 %v1332
      %1462 = vmatprep.subr.bf16.mxu0 %v1335
      %1463 = vmatpush1.bf16.msra.mxu0 %v1334
      %1464 = vmatprep.subr.bf16.mxu0 %v1337
      %1465 = vmatpush1.bf16.msra.mxu0 %v1336
      %1466 = vmatprep.subr.bf16.mxu0 %v1339
      %1467 = vmatpush1.bf16.msra.mxu0 %v1338
      %1468 = vmatprep.subr.bf16.mxu0 %v1341
      %1469 = vmatpush1.bf16.msra.mxu0 %v1340
      %1470 = vmatprep.subr.bf16.mxu0 %v1343
      %1471 = vmatpush1.bf16.msra.mxu0 %v1342
      %1472 = vmatprep.subr.bf16.mxu0 %v1345
      %1473 = vmatpush1.bf16.msra.mxu0 %v1344
      %1474 = vmatprep.subr.bf16.mxu0 %v1347
      %1475 = vmatpush1.bf16.msra.mxu0 %v1346
      %1476 = vmatprep.subr.bf16.mxu0 %v1349
      %1477 = vmatpush1.bf16.msra.mxu0 %v1348
      %1478 = vmatprep.subr.bf16.mxu0 %v1351
      %1479 = vmatpush1.bf16.msra.mxu0 %v1350
      %1480 = vmatprep.subr.bf16.mxu0 %v1353
      %1481 = vmatpush1.bf16.msra.mxu0 %v1352
      %1482 = vmatprep.subr.bf16.mxu0 %v1355
      %1483 = vmatpush1.bf16.msra.mxu0 %v1354
      %1484 = vmatprep.subr.bf16.mxu0 %v1357
      %1485 = vmatpush1.bf16.msra.mxu0 %v1356
      %1486 = vmatprep.subr.bf16.mxu0 %v1359
      %1487 = vmatpush1.bf16.msra.mxu0 %v1358
      %1488 = vmatprep.subr.bf16.mxu0 %v1361
      %1489 = vmatpush1.bf16.msra.mxu0 %v1360
      %1490 = vmatprep.mubr.bf16.mxu0 %v1067
      %1491 = vmatmul.mubr.bf16.gmra.mrb[0].mxu0 %v1066
      %v1492 = vpop.f32.mrb[0].mxu0
      %v1493 = vadd.f32 0.0, %v1492
      %v1494 = vpop.f32.mrb[0].mxu0
      %v1495 = vadd.f32 0.0, %v1494
      %v1496 = vpop.f32.mrb[0].mxu0
      %v1497 = vadd.f32 0.0, %v1496
      %v1498 = vpop.f32.mrb[0].mxu0
      %v1499 = vadd.f32 0.0, %v1498
      %1500 = vmatprep.mubr.bf16.mxu0 %v1071
      %1501 = vmatmul.mubr.bf16.gmra.mrb[0].mxu0 %v1070
      %v1502 = vpop.f32.mrb[0].mxu0
      %v1503 = vadd.f32 0.0, %v1502
      %v1504 = vpop.f32.mrb[0].mxu0
      %v1505 = vadd.f32 0.0, %v1504
      %v1506 = vpop.f32.mrb[0].mxu0
      %v1507 = vadd.f32 0.0, %v1506
      %v1508 = vpop.f32.mrb[0].mxu0
      %v1509 = vadd.f32 0.0, %v1508
      %1510 = vdwg.mxu0
      %1511 = vmatprep.subr.bf16.mxu0 %v1363
      %1512 = vmatpush1.bf16.msra.mxu0 %v1362
      %1513 = vmatprep.subr.bf16.mxu0 %v1365
      %1514 = vmatpush1.bf16.msra.mxu0 %v1364
      %1515 = vmatprep.subr.bf16.mxu0 %v1367
      %1516 = vmatpush1.bf16.msra.mxu0 %v1366
      %1517 = vmatprep.subr.bf16.mxu0 %v1369
      %1518 = vmatpush1.bf16.msra.mxu0 %v1368
      %1519 = vmatprep.subr.bf16.mxu0 %v1371
      %1520 = vmatpush1.bf16.msra.mxu0 %v1370
      %1521 = vmatprep.subr.bf16.mxu0 %v1373
      %1522 = vmatpush1.bf16.msra.mxu0 %v1372
      %1523 = vmatprep.subr.bf16.mxu0 %v1375
      %1524 = vmatpush1.bf16.msra.mxu0 %v1374
      %1525 = vmatprep.subr.bf16.mxu0 %v1377
      %1526 = vmatpush1.bf16.msra.mxu0 %v1376
      %1527 = vmatprep.subr.bf16.mxu0 %v1379
      %1528 = vmatpush1.bf16.msra.mxu0 %v1378
      %1529 = vmatprep.subr.bf16.mxu0 %v1381
      %1530 = vmatpush1.bf16.msra.mxu0 %v1380
      %1531 = vmatprep.subr.bf16.mxu0 %v1383
      %1532 = vmatpush1.bf16.msra.mxu0 %v1382
      %1533 = vmatprep.subr.bf16.mxu0 %v1385
      %1534 = vmatpush1.bf16.msra.mxu0 %v1384
      %1535 = vmatprep.subr.bf16.mxu0 %v1387
      %1536 = vmatpush1.bf16.msra.mxu0 %v1386
      %1537 = vmatprep.subr.bf16.mxu0 %v1389
      %1538 = vmatpush1.bf16.msra.mxu0 %v1388
      %1539 = vmatprep.subr.bf16.mxu0 %v1391
      %1540 = vmatpush1.bf16.msra.mxu0 %v1390
      %1541 = vmatprep.subr.bf16.mxu0 %v1393
      %1542 = vmatpush1.bf16.msra.mxu0 %v1392
      %1543 = vmatprep.mubr.bf16.mxu0 %v1069
      %1544 = vmatmul.mubr.bf16.gmra.mrb[0].mxu0 %v1068
      %v1545 = vpop.f32.mrb[0].mxu0
      %v1546 = vadd.f32 %v1493, %v1545
      %v1547 = vpop.f32.mrb[0].mxu0
      %v1548 = vadd.f32 %v1495, %v1547
      %v1549 = vpop.f32.mrb[0].mxu0
      %v1550 = vadd.f32 %v1497, %v1549
      %v1551 = vpop.f32.mrb[0].mxu0
      %v1552 = vadd.f32 %v1499, %v1551
      %1553 = vmatprep.mubr.bf16.mxu0 %v1073
      %1554 = vmatmul.mubr.bf16.gmra.mrb[0].mxu0 %v1072
      %v1555 = vpop.f32.mrb[0].mxu0
      %v1556 = vadd.f32 %v1503, %v1555
      %v1557 = vpop.f32.mrb[0].mxu0
      %v1558 = vadd.f32 %v1505, %v1557
      %v1559 = vpop.f32.mrb[0].mxu0
      %v1560 = vadd.f32 %v1507, %v1559
      %v1561 = vpop.f32.mrb[0].mxu0
      %v1562 = vadd.f32 %v1509, %v1561
      %1563 = vdwg.mxu0
      %s1564 = scalar_lea.vmem %s4, 2
      %v1565 = vld [vmem:[%s1564] ss:$4 sm:$0x3]
      %v1567 = vlaneseq
      %v1568 = vshrl.u32 %v1567, 7
      %v1569 = vsub.s32 0, %v1568
      %v1570 = vrot.slane %v1565, %v1569
      %v1571 = vlaneseq
      %v1572 = vshrl.u32 %v1571, 7
      %v1573 = vsub.s32 1, %v1572
      %v1574 = vrot.slane %v1565, %v1573
      %v1577 = vmul.f32 %v1546, %v1570
      %v1578 = vmul.f32 %v1548, %v1574
      %v1579 = vmul.f32 %v1550, %v1570
      %v1580 = vmul.f32 %v1552, %v1574
      %v1581 = vmul.f32 %v1556, %v1570
      %v1582 = vmul.f32 %v1558, %v1574
      %v1583 = vmul.f32 %v1560, %v1570
      %v1584 = vmul.f32 %v1562, %v1574
      %s1585 = scalar_lea.vmem %s4, 3
      %v1586 = vld [vmem:[%s1585] ss:$4 sm:$0x3]
      %v1588 = vlaneseq
      %v1589 = vshrl.u32 %v1588, 7
      %v1590 = vsub.s32 0, %v1589
      %v1591 = vrot.slane %v1586, %v1590
      %v1592 = vlaneseq
      %v1593 = vshrl.u32 %v1592, 7
      %v1594 = vsub.s32 1, %v1593
      %v1595 = vrot.slane %v1586, %v1594
      %v1598 = vadd.f32 %v1577, %v1591
      %v1599 = vadd.f32 %v1578, %v1595
      %v1600 = vadd.f32 %v1579, %v1591
      %v1601 = vadd.f32 %v1580, %v1595
      %v1602 = vadd.f32 %v1581, %v1591
      %v1603 = vadd.f32 %v1582, %v1595
      %v1604 = vadd.f32 %v1583, %v1591
      %v1605 = vadd.f32 %v1584, %v1595
      %v1606 = vmax.f32 %v1598, 0.0
      %v1607 = vmax.f32 %v1599, 0.0
      %v1608 = vmax.f32 %v1600, 0.0
      %v1609 = vmax.f32 %v1601, 0.0
      %v1610 = vmax.f32 %v1602, 0.0
      %v1611 = vmax.f32 %v1603, 0.0
      %v1612 = vmax.f32 %v1604, 0.0
      %v1613 = vmax.f32 %v1605, 0.0
      %1614 = vst [vmem:[%s250] sm:$0xff] %v1606
      %1615 = vst [vmem:[%s250 + $0x8] sm:$0xff] %v1607
      %1616 = vst [vmem:[%s250 + $0x10] sm:$0xff] %v1608
      %1617 = vst [vmem:[%s250 + $0x18] sm:$0xff] %v1609
      %1618 = vst [vmem:[%s250 + $0x20] sm:$0xff] %v1610
      %1619 = vst [vmem:[%s250 + $0x28] sm:$0xff] %v1611
      %1620 = vst [vmem:[%s250 + $0x30] sm:$0xff] %v1612
      %1621 = vst [vmem:[%s250 + $0x38] sm:$0xff] %v1613
      %s1622 = smul.u32 4, %s16
      %p1623 = scmp.lt.s32.totalorder %s1622, 7
      %s1624 = scalar_select %p1623, %s1622, 7
      %s1625 = smul.addr %s1624, 2
      %s1626 = smul.addr %s1625, 8
      %s1627 = scalar_lea.vmem %s5, %s1626
      // Predicated region
      $region41: #{decoder_block.1} parent=39 // pred_check
        %p1628 = pneg %p149
      $region42: #{decoder_block.1} parent=39 // pred_check_branch
        %1630 = sbr.rel (%p1628) target = $region44
      $region43: #{decoder_block.1} parent=39 // pred_region
        %s1631 = smul.u32 4, %s16
      $region44: #{decoder_block.1} parent=39 // pred_fallthru
        _
    $region40: #{decoder_block.1} parent=5 // pred_fallthru
      _
    %p1632 = scmp.le.s32.totalorder 2, %s11
    // Predicated region
    $region45: #{decoder_block.1} parent=5 // pred_check
      %p1633 = pneg %p1632
    $region46: #{decoder_block.1} parent=5 // pred_check_branch
      %1635 = sbr.rel (%p1633) target = $region48
    $region47: #{decoder_block.1} parent=5 // pred_region
      %s1636 = ssub.s32 %s11, 2
      // Predicated region
      $region49: #{decoder_block.1} parent=47 // pred_check
        %p1637 = pneg %p155
      $region50: #{decoder_block.1} parent=47 // pred_check_branch
        %1639 = sbr.rel (%p1637) target = $region52
      $region51: #{decoder_block.1} parent=47 // pred_region
        %s1640 = smul.u32 4, %s17
        %p1641 = scmp.lt.s32.totalorder %s1640, 7
        %s1642 = scalar_select %p1641, %s1640, 7
        %s1643 = smul.addr %s1642, 2
        %s1644 = smul.addr %s1643, 8
        %s1645 = scalar_lea.vmem %s5, %s1644
      $region52: #{decoder_block.1} parent=47 // pred_fallthru
        _
    $region48: #{decoder_block.1} parent=5 // pred_fallthru
      _
  $region6: #{decoder_block.1} parent=0 // loop_footer
    %s15 = sadd.s32 1, %s11
  $region7: #{decoder_block.1} parent=0 // loop_footer_branch
    %10 = sbr.rel target = $region3
  $region8: #{decoder_block.1} parent=0 // loop_exit
    _

</llo_original>
